<compile_context>
chip_gen: v7x
topology: tpu7x:2x2x1
jax: 0.10.0
libtpu: 0.0.40
codegen_flags: <defaults>
</compile_context>

<pallas_src>
import functools

import numpy as np
import jax
import jax.numpy as jnp
from jax import lax
from jax.experimental import pallas as pl
from jax.experimental.pallas import tpu as pltpu


# ---------------------- block-Toeplitz weight preparation ---------------------- #

def _conv3x3_row_toeplitz(w, w_img):
    """w: (C_out, C_in, 3, 3) Conv2d weight (stride 1, padding 1).

    Returns (3, w_img*C_in, w_img*C_out): for each ky a matrix T with
    T[xi*C_in + ci, xo*C_out + co] = w[co, ci, ky, kx], xi = xo + kx - 1
    (x zero-padding folded in by dropping out-of-range taps)."""
    c_out, c_in, K, _ = w.shape
    sel = np.zeros((K, w_img, w_img), np.float32)
    for kx in range(K):
        for xo in range(w_img):
            xi = xo + kx - 1
            if 0 <= xi < w_img:
                sel[kx, xi, xo] = 1.0
    wk = jnp.transpose(w, (2, 3, 1, 0))                       # (ky, kx, C_in, C_out)
    mat = jnp.einsum('kio,ykcd->yicod', jnp.asarray(sel), wk)
    return mat.reshape(K, w_img * c_in, w_img * c_out)


def _deconv_subpixel_toeplitz(w_up, w_in):
    """w_up: (C_in, C_out, 4, 4) ConvTranspose2d weight (stride 2, padding 1).

    Sub-pixel decomposition over output-row parity ry and window position dy:
        up_row[2a + ry] = sum_dy  x_rowpad[a + ry + dy] @ M[ry, dy]
    where x_rowpad is the input with one zero row above/below, rows flattened to
    (w_in*C_in).  Output columns are interleaved as ox*C_out + co with ox = 2b + rx
    (x zero-padding folded in).  Returns (4, w_in*C_in, 2*w_in*C_out) in order
    (ry,dy) = (0,0),(0,1),(1,0),(1,1)."""
    c_in, c_out = w_up.shape[0], w_up.shape[1]
    KTAP = ((3, 1), (2, 0))      # KTAP[parity][window-pos] -> kernel tap index
    sel = np.zeros((4, w_in, 2 * w_in), np.float32)
    for b in range(w_in):
        for rx in range(2):
            for dx in range(2):
                kx = KTAP[rx][dx]
                ix = b + rx + dx - 1
                if 0 <= ix < w_in:
                    sel[kx, ix, 2 * b + rx] = 1.0
    sel = jnp.asarray(sel)
    mats = []
    for ry in range(2):
        for dy in range(2):
            wsl = w_up[:, :, KTAP[ry][dy], :]                 # (C_in, C_out, kx)
            m = jnp.einsum('kio,cdk->icod', sel, wsl)
            mats.append(m.reshape(w_in * c_in, 2 * w_in * c_out))
    return jnp.stack(mats, axis=0)


def prepare_unet_up_conv2d(params, input1_shape, input2_shape, compute_dtype=jnp.bfloat16):
    """One-time weight prep (call once per model, OUTSIDE the per-step forward).

    Produces K-stacked block-Toeplitz weight matrices in `compute_dtype` (bf16) and
    lane-tiled f32 biases so the jitted hot path is nothing but the pallas_call."""
    _, C1, H1, W1 = input1_shape
    _, C2, H2, W2 = input2_shape
    C_up = params["b_up"].shape[0]
    C_out = params["b2"].shape[0]
    W_up = 2 * W2

    m = _deconv_subpixel_toeplitz(params["w_up"], W2)          # (4, W2*C2, W_up*C_up)
    w_ev = jnp.concatenate([m[0], m[1]], axis=0)               # (2*W2*C2, W_up*C_up)
    w_od = jnp.concatenate([m[2], m[3]], axis=0)

    t1a = _conv3x3_row_toeplitz(params["w1"][:, :C1], W_up)    # skip part (3, W_up*C1, .)
    t1b = _conv3x3_row_toeplitz(params["w1"][:, C1:], W_up)    # up part   (3, W_up*C_up, .)
    w1s = jnp.concatenate([t1a[0], t1a[1], t1a[2],
                           t1b[0], t1b[1], t1b[2]], axis=0)    # (3*(WCS+WCU), W_up*C_out)
    t2 = _conv3x3_row_toeplitz(params["w2"], W_up)
    w2s = jnp.concatenate([t2[0], t2[1], t2[2]], axis=0)       # (3*W_up*C_out, W_up*C_out)

    return dict(
        w_ev=w_ev.astype(compute_dtype), w_od=w_od.astype(compute_dtype),
        w1s=w1s.astype(compute_dtype), w2s=w2s.astype(compute_dtype),
        bup=jnp.tile(params["b_up"], W_up).reshape(1, W_up * C_up).astype(jnp.float32),
        b1=jnp.tile(params["b1"], W_up).reshape(1, W_up * C_out).astype(jnp.float32),
        b2=jnp.tile(params["b2"], W_up).reshape(1, W_up * C_out).astype(jnp.float32),
    )


# -------------------------------- Pallas kernel -------------------------------- #

def _make_fused_kernel(nb, H2, WC2, WCS, WCU, WCO):
    f32 = jnp.float32
    M = nb * H2

    def shift_dn(x):      # (nb, H2, L): out[b] = x[b-1], zero row at top  (per image)
        return jnp.concatenate([jnp.zeros_like(x[:, :1]), x[:, :-1]], axis=1)

    def shift_up(x):      # (nb, H2, L): out[b] = x[b+1], zero row at bottom
        return jnp.concatenate([x[:, 1:], jnp.zeros_like(x[:, :1])], axis=1)

    def mm(pieces, w_ref):
        # K-stacked matmul: lane-concat the row-shifted streams, one fat MXU dot.
        lhs = jnp.concatenate(pieces, axis=-1).reshape(M, -1)
        out = jnp.dot(lhs, w_ref[...], preferred_element_type=f32)
        return out.reshape(nb, H2, -1)

    def kernel(skip_ref, x2_ref, wev_ref, wod_ref, w1_ref, w2_ref,
               bup_ref, b1_ref, b2_ref, o_ref):
        bf = skip_ref.dtype
        skip = skip_ref[...]                       # (nb, H2, 2*WCS) paired rows (bf16)
        skip_e = skip[:, :, :WCS]                  # even full-res rows (lane slice, free)
        skip_o = skip[:, :, WCS:]                  # odd  full-res rows
        x2 = x2_ref[...]                           # (nb, H2, WC2) (bf16)

        # ---- ConvTranspose2d(k=4, s=2, p=1): sub-pixel even/odd output-row streams ----
        up_e = mm([shift_dn(x2), x2], wev_ref) + bup_ref[...]      # K = 2*WC2
        up_o = mm([x2, shift_up(x2)], wod_ref) + bup_ref[...]
        up_e = up_e.astype(bf)
        up_o = up_o.astype(bf)

        # ---- conv1 3x3/p1 over concat([skip, up], channels) + ReLU ----
        # channel-concat, row zero-padding and row interleave are all folded into the
        # K-stacked LHS / Toeplitz weights (K = 3*WCS + 3*WCU).
        y1_e = jnp.maximum(mm([shift_dn(skip_o), skip_e, skip_o,
                               shift_dn(up_o), up_e, up_o], w1_ref) + b1_ref[...], 0.0)
        y1_o = jnp.maximum(mm([skip_e, skip_o, shift_up(skip_e),
                               up_e, up_o, shift_up(up_e)], w1_ref) + b1_ref[...], 0.0)
        y1_e = y1_e.astype(bf)
        y1_o = y1_o.astype(bf)

        # ---- conv2 3x3/p1 + ReLU (K = 3*WCO) ----
        y2_e = jnp.maximum(mm([shift_dn(y1_o), y1_e, y1_o], w2_ref) + b2_ref[...], 0.0)
        y2_o = jnp.maximum(mm([y1_e, y1_o, shift_up(y1_e)], w2_ref) + b2_ref[...], 0.0)

        # paired-row, lane-dense output: pair row b = [full-res row 2b | row 2b+1]
        o_ref[...] = jnp.concatenate([y2_e, y2_o], axis=-1).astype(o_ref.dtype)

    return kernel


# ------------------------------ forward wrappers -------------------------------- #

def _default_fold_batch():
    """Fold batch into matmul M on 1-TC chips; keep grid=(N,) parallel on 2-TC v7x."""
    try:
        kind = jax.devices()[0].device_kind.lower()
        return not ("v7" in kind or "7x" in kind)
    except Exception:
        return True


def unet_up_conv2d_flat(skip_pairs, x2_flat, prep, *, fold_batch=True):
    """Hot path (jit this).  Inputs/outputs are lane-dense paired-row slabs:
       skip_pairs: (N, H2, 2*W_up*C1)  -- free reshape of padded NHWC skip
       x2_flat:    (N, H2, W2*C2)      -- free reshape of NHWC input2
       returns     (N, H2, 2*W_up*C_out) f32."""
    N, H2, WC2 = x2_flat.shape
    WCS = skip_pairs.shape[2] // 2
    WCU = prep["bup"].shape[1]
    WCO = prep["b1"].shape[1]
    for name, v in (("W2*C2", WC2), ("W_up*C1", WCS), ("W_up*C_up", WCU), ("W_up*C_out", WCO)):
        # TODO(synk): add a lane-padding path for channel counts that are not 128-dense.
        assert v % 128 == 0, f"{name}={v} must be a multiple of 128 (lane width)"

    nb = N if fold_batch else 1
    assert N % nb == 0
    kernel = _make_fused_kernel(nb, H2, WC2, WCS, WCU, WCO)

    return pl.pallas_call(
        kernel,
        out_shape=jax.ShapeDtypeStruct((N, H2, 2 * WCO), jnp.float32),
        grid=(N // nb,),
        in_specs=[
            pl.BlockSpec((nb, H2, 2 * WCS), lambda n: (n, 0, 0)),
            pl.BlockSpec((nb, H2, WC2), lambda n: (n, 0, 0)),
            pl.BlockSpec(prep["w_ev"].shape, lambda n: (0, 0)),
            pl.BlockSpec(prep["w_od"].shape, lambda n: (0, 0)),
            pl.BlockSpec(prep["w1s"].shape, lambda n: (0, 0)),
            pl.BlockSpec(prep["w2s"].shape, lambda n: (0, 0)),
            pl.BlockSpec((1, WCU), lambda n: (0, 0)),
            pl.BlockSpec((1, WCO), lambda n: (0, 0)),
            pl.BlockSpec((1, WCO), lambda n: (0, 0)),
        ],
        out_specs=pl.BlockSpec((nb, H2, 2 * WCO), lambda n: (n, 0, 0)),
        compiler_params=pltpu.CompilerParams(dimension_semantics=("parallel",)),
    )(skip_pairs, x2_flat, prep["w_ev"], prep["w_od"], prep["w1s"], prep["w2s"],
      prep["bup"], prep["b1"], prep["b2"])


def prepare_inputs(input1, input2, compute_dtype=jnp.bfloat16):
    """Layout plumbing (NCHW -> lane-dense paired rows).  In a real model the producer
    would already emit this layout; kept outside the jitted hot path."""
    N, C1, H1, W1 = input1.shape
    _, C2, H2, W2 = input2.shape
    H_up, W_up = 2 * H2, 2 * W2
    offset = H_up - H1
    assert offset % 2 == 0, "odd pad offset not supported (matches torch.cat requirement)"
    p = offset // 2
    x1 = jnp.transpose(input1, (0, 2, 3, 1)).astype(compute_dtype)
    if p:
        x1 = jnp.pad(x1, ((0, 0), (p, p), (p, p), (0, 0)))
    assert x1.shape[1] == H_up and x1.shape[2] == W_up
    skip_pairs = x1.reshape(N, H2, 2 * W_up * C1)              # pure reshape of NHWC
    x2_flat = jnp.transpose(input2, (0, 2, 3, 1)).astype(compute_dtype).reshape(N, H2, W2 * C2)
    return skip_pairs, x2_flat


def output_to_nchw(out_flat, c_out):
    N, H2, L = out_flat.shape
    w_up = (L // 2) // c_out
    y = out_flat.reshape(N, 2 * H2, w_up, c_out)               # pure reshape (row interleave)
    return jnp.transpose(y, (0, 3, 1, 2))


# --------------------------- parameters (synthetic) ----------------------------- #

def init_params(key, in_size, out_size):
    """Deterministic kaiming-normal (fan_in, relu gain) init, like weights_init_kaiming."""
    k1, k2, k3, k4, k5, k6 = jax.random.split(key, 6)
    fan_in_up = out_size * 4 * 4                 # PyTorch fan_in of ConvTranspose weight
    w_up = jax.random.normal(k1, (in_size, out_size, 4, 4), jnp.float32) * jnp.sqrt(2.0 / fan_in_up)
    b_up = 0.01 * jax.random.normal(k2, (out_size,), jnp.float32)
    w1 = jax.random.normal(k3, (out_size, in_size, 3, 3), jnp.float32) * jnp.sqrt(2.0 / (in_size * 9))
    b1 = 0.01 * jax.random.normal(k4, (out_size,), jnp.float32)
    w2 = jax.random.normal(k5, (out_size, out_size, 3, 3), jnp.float32) * jnp.sqrt(2.0 / (out_size * 9))
    b2 = 0.01 * jax.random.normal(k6, (out_size,), jnp.float32)
    return dict(w_up=w_up, b_up=b_up, w1=w1, b1=b1, w2=w2, b2=b2)


# ----------------------------- plain-JAX reference ------------------------------ #

def ref_forward(input1, input2, params):
    dn = ("NCHW", "OIHW", "NCHW")
    w_up_conv = jnp.transpose(params["w_up"][:, :, ::-1, ::-1], (1, 0, 2, 3))
    out2 = lax.conv_general_dilated(input2, w_up_conv, window_strides=(1, 1),
                                    padding=((2, 2), (2, 2)), lhs_dilation=(2, 2),
                                    dimension_numbers=dn)
    out2 = out2 + params["b_up"][None, :, None, None]
    p = (out2.shape[2] - input1.shape[2]) // 2
    out1 = jnp.pad(input1, ((0, 0), (0, 0), (p, p), (p, p)))
    x = jnp.concatenate([out1, out2], axis=1)
    y = lax.conv_general_dilated(x, params["w1"], (1, 1), ((1, 1), (1, 1)), dimension_numbers=dn)
    y = jnp.maximum(y + params["b1"][None, :, None, None], 0.0)
    y = lax.conv_general_dilated(y, params["w2"], (1, 1), ((1, 1), (1, 1)), dimension_numbers=dn)
    y = jnp.maximum(y + params["b2"][None, :, None, None], 0.0)
    return y


if __name__ == "__main__":
    in_size, out_size = 16, 8
    N = 2
    key = jax.random.PRNGKey(0)
    kx1, kx2, kp = jax.random.split(key, 3)
    # input2: coarse features (in_size ch, 8x8); input1: skip connection with
    # in_size - out_size channels at 16x16 so the channel concat has in_size channels.
    input1 = jax.random.normal(kx1, (N, in_size - out_size, 16, 16), jnp.float32)
    input2 = jax.random.normal(kx2, (N, in_size, 8, 8), jnp.float32)
    params = init_params(kp, in_size, out_size)

    # one-time weight prep (hoisted out of the per-step forward)
    prep = prepare_unet_up_conv2d(params, input1.shape, input2.shape)

    fold = _default_fold_batch()
    fwd = jax.jit(functools.partial(unet_up_conv2d_flat, fold_batch=fold))

    # layout plumbing kept outside the jitted hot path
    skip_pairs, x2_flat = prepare_inputs(input1, input2)
    out_flat = jax.block_until_ready(fwd(skip_pairs, x2_flat, prep))
    out = output_to_nchw(out_flat, out_size)

    ref = ref_forward(input1, input2, params)
    assert out.shape == ref.shape == (N, out_size, 16, 16), (out.shape, ref.shape)
    max_err = float(jnp.max(jnp.abs(out - ref)))
    # bf16 weights/activations (f32 accumulation): expect ~1e-2 absolute error
    assert jnp.allclose(out, ref, rtol=5e-2, atol=5e-2), max_err
    print("KERNEL_OK")
</pallas_src>

<mosaic_0001>
module attributes {stable_mosaic.version = 11 : i64} {
  func.func @kernel(%arg0: i32, %arg1: memref<2x8x256xbf16, #tpu.memory_space<vmem>>, %arg2: memref<2x8x128xbf16, #tpu.memory_space<vmem>>, %arg3: memref<256x128xbf16, #tpu.memory_space<vmem>>, %arg4: memref<256x128xbf16, #tpu.memory_space<vmem>>, %arg5: memref<768x128xbf16, #tpu.memory_space<vmem>>, %arg6: memref<384x128xbf16, #tpu.memory_space<vmem>>, %arg7: memref<1x128xf32, #tpu.memory_space<vmem>>, %arg8: memref<1x128xf32, #tpu.memory_space<vmem>>, %arg9: memref<1x128xf32, #tpu.memory_space<vmem>>, %arg10: memref<2x8x256xf32, #tpu.memory_space<vmem>>) attributes {dimension_semantics = [#tpu.dimension_semantics<parallel>], iteration_bounds = array<i64: 1>, scalar_prefetch = 0 : i64, scratch_operands = 0 : i64, tpu.core_type = #tpu.core_type<tc>, window_params = [{transform_indices = @transform_0, window_bounds = array<i64: 2, 8, 256>}, {transform_indices = @transform_1, window_bounds = array<i64: 2, 8, 128>}, {pipeline_mode = #tpu.pipeline_mode<synchronous>, transform_indices = @transform_2, window_bounds = array<i64: 256, 128>}, {pipeline_mode = #tpu.pipeline_mode<synchronous>, transform_indices = @transform_3, window_bounds = array<i64: 256, 128>}, {pipeline_mode = #tpu.pipeline_mode<synchronous>, transform_indices = @transform_4, window_bounds = array<i64: 768, 128>}, {pipeline_mode = #tpu.pipeline_mode<synchronous>, transform_indices = @transform_5, window_bounds = array<i64: 384, 128>}, {pipeline_mode = #tpu.pipeline_mode<synchronous>, transform_indices = @transform_6, window_bounds = array<i64: 1, 128>}, {pipeline_mode = #tpu.pipeline_mode<synchronous>, transform_indices = @transform_7, window_bounds = array<i64: 1, 128>}, {pipeline_mode = #tpu.pipeline_mode<synchronous>, transform_indices = @transform_8, window_bounds = array<i64: 1, 128>}, {transform_indices = @transform_9, window_bounds = array<i64: 2, 8, 256>}]} {
    %c0 = arith.constant 0 : index
    %c0_0 = arith.constant 0 : index
    %c0_1 = arith.constant 0 : index
    %0 = vector.load %arg1[%c0, %c0_0, %c0_1] : memref<2x8x256xbf16, #tpu.memory_space<vmem>>, vector<2x8x256xbf16>
    %1 = vector.extract_strided_slice %0 {offsets = [0, 0, 0], sizes = [2, 8, 128], strides = [1, 1, 1]} : vector<2x8x256xbf16> to vector<2x8x128xbf16>
    %2 = vector.extract_strided_slice %0 {offsets = [0, 0, 128], sizes = [2, 8, 128], strides = [1, 1, 1]} : vector<2x8x256xbf16> to vector<2x8x128xbf16>
    %c0_2 = arith.constant 0 : index
    %c0_3 = arith.constant 0 : index
    %c0_4 = arith.constant 0 : index
    %3 = vector.load %arg2[%c0_2, %c0_3, %c0_4] : memref<2x8x128xbf16, #tpu.memory_space<vmem>>, vector<2x8x128xbf16>
    %cst = arith.constant 0.000000e+00 : bf16
    %4 = vector.broadcast %cst : bf16 to vector<2x1x128xbf16>
    %5 = vector.extract_strided_slice %3 {offsets = [0, 0, 0], sizes = [2, 7, 128], strides = [1, 1, 1]} : vector<2x8x128xbf16> to vector<2x7x128xbf16>
    %6 = tpu.concatenate %4, %5 in 1 : vector<2x1x128xbf16>, vector<2x7x128xbf16> -> vector<2x8x128xbf16>
    %7 = tpu.concatenate %6, %3 in 2 : vector<2x8x128xbf16>, vector<2x8x128xbf16> -> vector<2x8x256xbf16>
    %8 = vector.shape_cast %7 : vector<2x8x256xbf16> to vector<16x256xbf16>
    %c0_5 = arith.constant 0 : index
    %c0_6 = arith.constant 0 : index
    %9 = vector.load %arg3[%c0_5, %c0_6] : memref<256x128xbf16, #tpu.memory_space<vmem>>, vector<256x128xbf16>
    %cst_7 = arith.constant dense<0.000000e+00> : vector<16x128xf32>
    %10 = tpu.matmul %8, %9, %cst_7 {dimension_numbers = #tpu.dot_dimension_numbers<[1], [0], [0], [1], [0, 0, 1, 1], [], []>} : vector<16x256xbf16>, vector<256x128xbf16>, vector<16x128xf32> -> vector<16x128xf32>
    %11 = vector.shape_cast %10 : vector<16x128xf32> to vector<2x8x128xf32>
    %c0_8 = arith.constant 0 : index
    %c0_9 = arith.constant 0 : index
    %12 = vector.load %arg7[%c0_8, %c0_9] : memref<1x128xf32, #tpu.memory_space<vmem>>, vector<1x128xf32>
    %13 = vector.shape_cast %12 : vector<1x128xf32> to vector<1x1x128xf32>
    %14 = vector.broadcast %13 : vector<1x1x128xf32> to vector<2x8x128xf32>
    %15 = arith.addf %11, %14 : vector<2x8x128xf32>
    %16 = vector.extract_strided_slice %3 {offsets = [0, 1, 0], sizes = [2, 7, 128], strides = [1, 1, 1]} : vector<2x8x128xbf16> to vector<2x7x128xbf16>
    %cst_10 = arith.constant 0.000000e+00 : bf16
    %17 = vector.broadcast %cst_10 : bf16 to vector<2x1x128xbf16>
    %18 = tpu.concatenate %16, %17 in 1 : vector<2x7x128xbf16>, vector<2x1x128xbf16> -> vector<2x8x128xbf16>
    %19 = tpu.concatenate %3, %18 in 2 : vector<2x8x128xbf16>, vector<2x8x128xbf16> -> vector<2x8x256xbf16>
    %20 = vector.shape_cast %19 : vector<2x8x256xbf16> to vector<16x256xbf16>
    %c0_11 = arith.constant 0 : index
    %c0_12 = arith.constant 0 : index
    %21 = vector.load %arg4[%c0_11, %c0_12] : memref<256x128xbf16, #tpu.memory_space<vmem>>, vector<256x128xbf16>
    %cst_13 = arith.constant dense<0.000000e+00> : vector<16x128xf32>
    %22 = tpu.matmul %20, %21, %cst_13 {dimension_numbers = #tpu.dot_dimension_numbers<[1], [0], [0], [1], [0, 0, 1, 1], [], []>} : vector<16x256xbf16>, vector<256x128xbf16>, vector<16x128xf32> -> vector<16x128xf32>
    %23 = vector.shape_cast %22 : vector<16x128xf32> to vector<2x8x128xf32>
    %c0_14 = arith.constant 0 : index
    %c0_15 = arith.constant 0 : index
    %24 = vector.load %arg7[%c0_14, %c0_15] : memref<1x128xf32, #tpu.memory_space<vmem>>, vector<1x128xf32>
    %25 = vector.shape_cast %24 : vector<1x128xf32> to vector<1x1x128xf32>
    %26 = vector.broadcast %25 : vector<1x1x128xf32> to vector<2x8x128xf32>
    %27 = arith.addf %23, %26 : vector<2x8x128xf32>
    %28 = arith.truncf %15 : vector<2x8x128xf32> to vector<2x8x128xbf16>
    %29 = arith.truncf %27 : vector<2x8x128xf32> to vector<2x8x128xbf16>
    %cst_16 = arith.constant 0.000000e+00 : bf16
    %30 = vector.broadcast %cst_16 : bf16 to vector<2x1x128xbf16>
    %31 = vector.extract_strided_slice %2 {offsets = [0, 0, 0], sizes = [2, 7, 128], strides = [1, 1, 1]} : vector<2x8x128xbf16> to vector<2x7x128xbf16>
    %32 = tpu.concatenate %30, %31 in 1 : vector<2x1x128xbf16>, vector<2x7x128xbf16> -> vector<2x8x128xbf16>
    %cst_17 = arith.constant 0.000000e+00 : bf16
    %33 = vector.broadcast %cst_17 : bf16 to vector<2x1x128xbf16>
    %34 = vector.extract_strided_slice %29 {offsets = [0, 0, 0], sizes = [2, 7, 128], strides = [1, 1, 1]} : vector<2x8x128xbf16> to vector<2x7x128xbf16>
    %35 = tpu.concatenate %33, %34 in 1 : vector<2x1x128xbf16>, vector<2x7x128xbf16> -> vector<2x8x128xbf16>
    %36 = tpu.concatenate %32, %1, %2, %35, %28, %29 in 2 : vector<2x8x128xbf16>, vector<2x8x128xbf16>, vector<2x8x128xbf16>, vector<2x8x128xbf16>, vector<2x8x128xbf16>, vector<2x8x128xbf16> -> vector<2x8x768xbf16>
    %37 = vector.shape_cast %36 : vector<2x8x768xbf16> to vector<16x768xbf16>
    %c0_18 = arith.constant 0 : index
    %c0_19 = arith.constant 0 : index
    %38 = vector.load %arg5[%c0_18, %c0_19] : memref<768x128xbf16, #tpu.memory_space<vmem>>, vector<768x128xbf16>
    %cst_20 = arith.constant dense<0.000000e+00> : vector<16x128xf32>
    %39 = tpu.matmul %37, %38, %cst_20 {dimension_numbers = #tpu.dot_dimension_numbers<[1], [0], [0], [1], [0, 0, 1, 1], [], []>} : vector<16x768xbf16>, vector<768x128xbf16>, vector<16x128xf32> -> vector<16x128xf32>
    %40 = vector.shape_cast %39 : vector<16x128xf32> to vector<2x8x128xf32>
    %c0_21 = arith.constant 0 : index
    %c0_22 = arith.constant 0 : index
    %41 = vector.load %arg8[%c0_21, %c0_22] : memref<1x128xf32, #tpu.memory_space<vmem>>, vector<1x128xf32>
    %42 = vector.shape_cast %41 : vector<1x128xf32> to vector<1x1x128xf32>
    %43 = vector.broadcast %42 : vector<1x1x128xf32> to vector<2x8x128xf32>
    %44 = arith.addf %40, %43 : vector<2x8x128xf32>
    %cst_23 = arith.constant 0.000000e+00 : f32
    %45 = vector.broadcast %cst_23 : f32 to vector<2x8x128xf32>
    %46 = arith.maximumf %44, %45 : vector<2x8x128xf32>
    %47 = vector.extract_strided_slice %1 {offsets = [0, 1, 0], sizes = [2, 7, 128], strides = [1, 1, 1]} : vector<2x8x128xbf16> to vector<2x7x128xbf16>
    %cst_24 = arith.constant 0.000000e+00 : bf16
    %48 = vector.broadcast %cst_24 : bf16 to vector<2x1x128xbf16>
    %49 = tpu.concatenate %47, %48 in 1 : vector<2x7x128xbf16>, vector<2x1x128xbf16> -> vector<2x8x128xbf16>
    %50 = vector.extract_strided_slice %28 {offsets = [0, 1, 0], sizes = [2, 7, 128], strides = [1, 1, 1]} : vector<2x8x128xbf16> to vector<2x7x128xbf16>
    %cst_25 = arith.constant 0.000000e+00 : bf16
    %51 = vector.broadcast %cst_25 : bf16 to vector<2x1x128xbf16>
    %52 = tpu.concatenate %50, %51 in 1 : vector<2x7x128xbf16>, vector<2x1x128xbf16> -> vector<2x8x128xbf16>
    %53 = tpu.concatenate %1, %2, %49, %28, %29, %52 in 2 : vector<2x8x128xbf16>, vector<2x8x128xbf16>, vector<2x8x128xbf16>, vector<2x8x128xbf16>, vector<2x8x128xbf16>, vector<2x8x128xbf16> -> vector<2x8x768xbf16>
    %54 = vector.shape_cast %53 : vector<2x8x768xbf16> to vector<16x768xbf16>
    %c0_26 = arith.constant 0 : index
    %c0_27 = arith.constant 0 : index
    %55 = vector.load %arg5[%c0_26, %c0_27] : memref<768x128xbf16, #tpu.memory_space<vmem>>, vector<768x128xbf16>
    %cst_28 = arith.constant dense<0.000000e+00> : vector<16x128xf32>
    %56 = tpu.matmul %54, %55, %cst_28 {dimension_numbers = #tpu.dot_dimension_numbers<[1], [0], [0], [1], [0, 0, 1, 1], [], []>} : vector<16x768xbf16>, vector<768x128xbf16>, vector<16x128xf32> -> vector<16x128xf32>
    %57 = vector.shape_cast %56 : vector<16x128xf32> to vector<2x8x128xf32>
    %c0_29 = arith.constant 0 : index
    %c0_30 = arith.constant 0 : index
    %58 = vector.load %arg8[%c0_29, %c0_30] : memref<1x128xf32, #tpu.memory_space<vmem>>, vector<1x128xf32>
    %59 = vector.shape_cast %58 : vector<1x128xf32> to vector<1x1x128xf32>
    %60 = vector.broadcast %59 : vector<1x1x128xf32> to vector<2x8x128xf32>
    %61 = arith.addf %57, %60 : vector<2x8x128xf32>
    %cst_31 = arith.constant 0.000000e+00 : f32
    %62 = vector.broadcast %cst_31 : f32 to vector<2x8x128xf32>
    %63 = arith.maximumf %61, %62 : vector<2x8x128xf32>
    %64 = arith.truncf %46 : vector<2x8x128xf32> to vector<2x8x128xbf16>
    %65 = arith.truncf %63 : vector<2x8x128xf32> to vector<2x8x128xbf16>
    %cst_32 = arith.constant 0.000000e+00 : bf16
    %66 = vector.broadcast %cst_32 : bf16 to vector<2x1x128xbf16>
    %67 = vector.extract_strided_slice %65 {offsets = [0, 0, 0], sizes = [2, 7, 128], strides = [1, 1, 1]} : vector<2x8x128xbf16> to vector<2x7x128xbf16>
    %68 = tpu.concatenate %66, %67 in 1 : vector<2x1x128xbf16>, vector<2x7x128xbf16> -> vector<2x8x128xbf16>
    %69 = tpu.concatenate %68, %64, %65 in 2 : vector<2x8x128xbf16>, vector<2x8x128xbf16>, vector<2x8x128xbf16> -> vector<2x8x384xbf16>
    %70 = vector.shape_cast %69 : vector<2x8x384xbf16> to vector<16x384xbf16>
    %c0_33 = arith.constant 0 : index
    %c0_34 = arith.constant 0 : index
    %71 = vector.load %arg6[%c0_33, %c0_34] : memref<384x128xbf16, #tpu.memory_space<vmem>>, vector<384x128xbf16>
    %cst_35 = arith.constant dense<0.000000e+00> : vector<16x128xf32>
    %72 = tpu.matmul %70, %71, %cst_35 {dimension_numbers = #tpu.dot_dimension_numbers<[1], [0], [0], [1], [0, 0, 1, 1], [], []>} : vector<16x384xbf16>, vector<384x128xbf16>, vector<16x128xf32> -> vector<16x128xf32>
    %73 = vector.shape_cast %72 : vector<16x128xf32> to vector<2x8x128xf32>
    %c0_36 = arith.constant 0 : index
    %c0_37 = arith.constant 0 : index
    %74 = vector.load %arg9[%c0_36, %c0_37] : memref<1x128xf32, #tpu.memory_space<vmem>>, vector<1x128xf32>
    %75 = vector.shape_cast %74 : vector<1x128xf32> to vector<1x1x128xf32>
    %76 = vector.broadcast %75 : vector<1x1x128xf32> to vector<2x8x128xf32>
    %77 = arith.addf %73, %76 : vector<2x8x128xf32>
    %cst_38 = arith.constant 0.000000e+00 : f32
    %78 = vector.broadcast %cst_38 : f32 to vector<2x8x128xf32>
    %79 = arith.maximumf %77, %78 : vector<2x8x128xf32>
    %80 = vector.extract_strided_slice %64 {offsets = [0, 1, 0], sizes = [2, 7, 128], strides = [1, 1, 1]} : vector<2x8x128xbf16> to vector<2x7x128xbf16>
    %cst_39 = arith.constant 0.000000e+00 : bf16
    %81 = vector.broadcast %cst_39 : bf16 to vector<2x1x128xbf16>
    %82 = tpu.concatenate %80, %81 in 1 : vector<2x7x128xbf16>, vector<2x1x128xbf16> -> vector<2x8x128xbf16>
    %83 = tpu.concatenate %64, %65, %82 in 2 : vector<2x8x128xbf16>, vector<2x8x128xbf16>, vector<2x8x128xbf16> -> vector<2x8x384xbf16>
    %84 = vector.shape_cast %83 : vector<2x8x384xbf16> to vector<16x384xbf16>
    %c0_40 = arith.constant 0 : index
    %c0_41 = arith.constant 0 : index
    %85 = vector.load %arg6[%c0_40, %c0_41] : memref<384x128xbf16, #tpu.memory_space<vmem>>, vector<384x128xbf16>
    %cst_42 = arith.constant dense<0.000000e+00> : vector<16x128xf32>
    %86 = tpu.matmul %84, %85, %cst_42 {dimension_numbers = #tpu.dot_dimension_numbers<[1], [0], [0], [1], [0, 0, 1, 1], [], []>} : vector<16x384xbf16>, vector<384x128xbf16>, vector<16x128xf32> -> vector<16x128xf32>
    %87 = vector.shape_cast %86 : vector<16x128xf32> to vector<2x8x128xf32>
    %c0_43 = arith.constant 0 : index
    %c0_44 = arith.constant 0 : index
    %88 = vector.load %arg9[%c0_43, %c0_44] : memref<1x128xf32, #tpu.memory_space<vmem>>, vector<1x128xf32>
    %89 = vector.shape_cast %88 : vector<1x128xf32> to vector<1x1x128xf32>
    %90 = vector.broadcast %89 : vector<1x1x128xf32> to vector<2x8x128xf32>
    %91 = arith.addf %87, %90 : vector<2x8x128xf32>
    %cst_45 = arith.constant 0.000000e+00 : f32
    %92 = vector.broadcast %cst_45 : f32 to vector<2x8x128xf32>
    %93 = arith.maximumf %91, %92 : vector<2x8x128xf32>
    %94 = tpu.concatenate %79, %93 in 2 : vector<2x8x128xf32>, vector<2x8x128xf32> -> vector<2x8x256xf32>
    %c0_46 = arith.constant 0 : index
    %c0_47 = arith.constant 0 : index
    %c0_48 = arith.constant 0 : index
    %95 = vector.load %arg10[%c0_46, %c0_47, %c0_48] : memref<2x8x256xf32, #tpu.memory_space<vmem>>, vector<2x8x256xf32>
    tpu.vector_store %arg10[%c0_46, %c0_47, %c0_48], %94 {strides = array<i32>} : memref<2x8x256xf32, #tpu.memory_space<vmem>>, vector<2x8x256xf32>,
    return
  }
  func.func @transform_0(%arg0: i32) -> (i32, i32, i32) {
    %c0_i32 = arith.constant 0 : i32
    %c0_i32_0 = arith.constant 0 : i32
    %c0_i32_1 = arith.constant 0 : i32
    return %arg0, %c0_i32, %c0_i32_0 : i32, i32, i32
  }
  func.func @transform_1(%arg0: i32) -> (i32, i32, i32) {
    %c0_i32 = arith.constant 0 : i32
    %c0_i32_0 = arith.constant 0 : i32
    %c0_i32_1 = arith.constant 0 : i32
    return %arg0, %c0_i32, %c0_i32_0 : i32, i32, i32
  }
  func.func @transform_2(%arg0: i32) -> (i32, i32) {
    %c0_i32 = arith.constant 0 : i32
    %c0_i32_0 = arith.constant 0 : i32
    %c0_i32_1 = arith.constant 0 : i32
    return %c0_i32, %c0_i32_0 : i32, i32
  }
  func.func @transform_3(%arg0: i32) -> (i32, i32) {
    %c0_i32 = arith.constant 0 : i32
    %c0_i32_0 = arith.constant 0 : i32
    %c0_i32_1 = arith.constant 0 : i32
    return %c0_i32, %c0_i32_0 : i32, i32
  }
  func.func @transform_4(%arg0: i32) -> (i32, i32) {
    %c0_i32 = arith.constant 0 : i32
    %c0_i32_0 = arith.constant 0 : i32
    %c0_i32_1 = arith.constant 0 : i32
    return %c0_i32, %c0_i32_0 : i32, i32
  }
  func.func @transform_5(%arg0: i32) -> (i32, i32) {
    %c0_i32 = arith.constant 0 : i32
    %c0_i32_0 = arith.constant 0 : i32
    %c0_i32_1 = arith.constant 0 : i32
    return %c0_i32, %c0_i32_0 : i32, i32
  }
  func.func @transform_6(%arg0: i32) -> (i32, i32) {
    %c0_i32 = arith.constant 0 : i32
    %c0_i32_0 = arith.constant 0 : i32
    %c0_i32_1 = arith.constant 0 : i32
    return %c0_i32, %c0_i32_0 : i32, i32
  }
  func.func @transform_7(%arg0: i32) -> (i32, i32) {
    %c0_i32 = arith.constant 0 : i32
    %c0_i32_0 = arith.constant 0 : i32
    %c0_i32_1 = arith.constant 0 : i32
    return %c0_i32, %c0_i32_0 : i32, i32
  }
  func.func @transform_8(%arg0: i32) -> (i32, i32) {
    %c0_i32 = arith.constant 0 : i32
    %c0_i32_0 = arith.constant 0 : i32
    %c0_i32_1 = arith.constant 0 : i32
    return %c0_i32, %c0_i32_0 : i32, i32
  }
  func.func @transform_9(%arg0: i32) -> (i32, i32, i32) {
    %c0_i32 = arith.constant 0 : i32
    %c0_i32_0 = arith.constant 0 : i32
    %c0_i32_1 = arith.constant 0 : i32
    return %arg0, %c0_i32, %c0_i32_0 : i32, i32, i32
  }
}

</mosaic_0001>

<llo_original>
// kernel: unet_up_conv2d_flat.1
$region0: #{unet_up_conv2d_flat.1}
  #allocation0 [shape = 'u32[]', space=smem, size = 0x4, offset = 0x4, fixed_abs, tag = 'smem constant byte address 0x4 - core index']
  #allocation1 [shape = 'u32[144,128]{1,0:T(1,128)}', space=vmem, size = 0x12000, scoped, tag = 'internal scratch']
  %s0 = inlined_call_operand.hbm [shape: bf16[2,8,256], index: 0, kind: input, shape index: {}]
  %s1 = inlined_call_operand.hbm [shape: bf16[2,8,128], index: 1, kind: input, shape index: {}]
  %s2 = inlined_call_operand.hbm [shape: bf16[256,128], index: 2, kind: input, shape index: {}]
  %s3 = inlined_call_operand.hbm [shape: bf16[256,128], index: 3, kind: input, shape index: {}]
  %s4 = inlined_call_operand.hbm [shape: bf16[768,128], index: 4, kind: input, shape index: {}]
  %s5 = inlined_call_operand.hbm [shape: bf16[384,128], index: 5, kind: input, shape index: {}]
  %s6 = inlined_call_operand.vmem [shape: f32[1,128], index: 6, kind: input, shape index: {}]
  %s7 = inlined_call_operand.vmem [shape: f32[1,128], index: 7, kind: input, shape index: {}]
  %s8 = inlined_call_operand.vmem [shape: f32[1,128], index: 8, kind: input, shape index: {}]
  %s9 = inlined_call_operand.hbm [shape: f32[2,8,256], index: 9, kind: output, shape index: {}]
  %s10 = sld [smem:[#allocation0]]
  $region70: #{unet_up_conv2d_flat.1} parent=0
    _
  %s12 = ssub.s32 1, %s10
  %s13 = scalar_select 0, %s12, %s10
  $region1: #{unet_up_conv2d_flat.1} parent=0
    #allocation2 [shape = 'u8[8192]{0}', space=vmem, size = 0x2000, scoped, tag = 'input window, operand 0, single buffered']
    #allocation3 [shape = 's32[1]{0}', space=sflag, size = 0x4, scoped, tag = 'scoped memory for unet_up_conv2d_flat.1']
    #allocation4 [shape = 's32[1]{0}', space=sflag, size = 0x4, scoped, tag = 'scoped memory for unet_up_conv2d_flat.1']
    #allocation5 [shape = 'u8[4096]{0}', space=vmem, size = 0x1000, scoped, tag = 'input window, operand 1, single buffered']
    #allocation6 [shape = 's32[1]{0}', space=sflag, size = 0x4, scoped, tag = 'scoped memory for unet_up_conv2d_flat.1']
    #allocation7 [shape = 'u8[65536]{0}', space=vmem, size = 0x10000, scoped, tag = 'input window, operand 2, single buffered']
    #allocation8 [shape = 'u8[65536]{0}', space=vmem, size = 0x10000, scoped, tag = 'input window, operand 3, single buffered']
    #allocation9 [shape = 's32[1]{0}', space=sflag, size = 0x4, scoped, tag = 'scoped memory for unet_up_conv2d_flat.1']
    #allocation10 [shape = 'u8[196608]{0}', space=vmem, size = 0x30000, scoped, tag = 'input window, operand 4, single buffered']
    #allocation11 [shape = 'u8[98304]{0}', space=vmem, size = 0x18000, scoped, tag = 'input window, operand 5, single buffered']
    #allocation12 [shape = 's32[1]{0}', space=sflag, size = 0x4, scoped, tag = 'scoped memory for unet_up_conv2d_flat.1']
    #allocation13 [shape = 'u8[16384]{0}', space=vmem, size = 0x4000, scoped, tag = 'output window, operand 0, single buffered']
    %14 = vsyncpa [#allocation3], 0
    %15 = vsyncpa [#allocation6], 0
    %16 = vsyncpa [#allocation9], 0
    %17 = vsyncpa [#allocation12], 0
    %18 = vsyncpa [#allocation4], 0
    // Predicated region
    $region2: #{unet_up_conv2d_flat.1} parent=1 // pred_check
      _
    $region3: #{unet_up_conv2d_flat.1} parent=1 // pred_check_branch
      %20 = sbr.rel (0) target = $region5
    $region4: #{unet_up_conv2d_flat.1} parent=1 // pred_region
      %s22 = ssub.s32 256, 256
      %23 = vsyncadd [#allocation3], %s22
      %s24 = sshll.u32 [#allocation2], 4
      %s25 = int_to_ptr.vmem [resolvable:$true] %s24
      %30 = dma.hbm_to_vmem [thread:$0]  %s0, 256, %s25, [#allocation3], 128, 128, 8
    $region5: #{unet_up_conv2d_flat.1} parent=1 // pred_fallthru
      _
    // Predicated region
    $region6: #{unet_up_conv2d_flat.1} parent=1 // pred_check
      _
    $region7: #{unet_up_conv2d_flat.1} parent=1 // pred_check_branch
      %32 = sbr.rel (0) target = $region9
    $region8: #{unet_up_conv2d_flat.1} parent=1 // pred_region
      %s34 = ssub.s32 128, 128
      %35 = vsyncadd [#allocation6], %s34
      %s36 = sshll.u32 [#allocation5], 4
      %s37 = int_to_ptr.vmem [resolvable:$true] %s36
      %42 = dma.hbm_to_vmem [thread:$0]  %s1, 128, %s37, [#allocation6], 64, 64, 4
    $region9: #{unet_up_conv2d_flat.1} parent=1 // pred_fallthru
      _
    // Predicated region
    $region10: #{unet_up_conv2d_flat.1} parent=1 // pred_check
      _
    $region11: #{unet_up_conv2d_flat.1} parent=1 // pred_check_branch
      %44 = sbr.rel (0) target = $region13
    $region12: #{unet_up_conv2d_flat.1} parent=1 // pred_region
      %s46 = ssub.s32 2048, 2048
      %47 = vsyncadd [#allocation6], %s46
      %s48 = sshll.u32 [#allocation7], 4
      %s49 = int_to_ptr.vmem [resolvable:$true] %s48
      %54 = dma.hbm_to_vmem [thread:$0]  %s2, 2048, %s49, [#allocation6], 64, 64, 4
    $region13: #{unet_up_conv2d_flat.1} parent=1 // pred_fallthru
      _
    // Predicated region
    $region14: #{unet_up_conv2d_flat.1} parent=1 // pred_check
      _
    $region15: #{unet_up_conv2d_flat.1} parent=1 // pred_check_branch
      %56 = sbr.rel (0) target = $region17
    $region16: #{unet_up_conv2d_flat.1} parent=1 // pred_region
      %s58 = ssub.s32 2048, 2048
      %59 = vsyncadd [#allocation9], %s58
      %s60 = sshll.u32 [#allocation8], 4
      %s61 = int_to_ptr.vmem [resolvable:$true] %s60
      %66 = dma.hbm_to_vmem [thread:$0]  %s3, 2048, %s61, [#allocation9], 64, 64, 4
    $region17: #{unet_up_conv2d_flat.1} parent=1 // pred_fallthru
      _
    // Predicated region
    $region18: #{unet_up_conv2d_flat.1} parent=1 // pred_check
      _
    $region19: #{unet_up_conv2d_flat.1} parent=1 // pred_check_branch
      %68 = sbr.rel (0) target = $region21
    $region20: #{unet_up_conv2d_flat.1} parent=1 // pred_region
      %s70 = ssub.s32 6144, 6144
      %71 = vsyncadd [#allocation9], %s70
      %s72 = sshll.u32 [#allocation10], 4
      %s73 = int_to_ptr.vmem [resolvable:$true] %s72
      %78 = dma.hbm_to_vmem [thread:$0]  %s4, 6144, %s73, [#allocation9], 64, 64, 4
    $region21: #{unet_up_conv2d_flat.1} parent=1 // pred_fallthru
      _
    // Predicated region
    $region22: #{unet_up_conv2d_flat.1} parent=1 // pred_check
      _
    $region23: #{unet_up_conv2d_flat.1} parent=1 // pred_check_branch
      %80 = sbr.rel (0) target = $region25
    $region24: #{unet_up_conv2d_flat.1} parent=1 // pred_region
      %s82 = ssub.s32 3072, 3072
      %83 = vsyncadd [#allocation12], %s82
      %s84 = sshll.u32 [#allocation11], 4
      %s85 = int_to_ptr.vmem [resolvable:$true] %s84
      %90 = dma.hbm_to_vmem [thread:$0]  %s5, 3072, %s85, [#allocation12], 64, 64, 4
    $region25: #{unet_up_conv2d_flat.1} parent=1 // pred_fallthru
      _
    // Predicated region
    $region26: #{unet_up_conv2d_flat.1} parent=1 // pred_check
      _
    $region27: #{unet_up_conv2d_flat.1} parent=1 // pred_check_branch
      %92 = sbr.rel (0) target = $region29
    $region28: #{unet_up_conv2d_flat.1} parent=1 // pred_region
      _
    $region29: #{unet_up_conv2d_flat.1} parent=1 // pred_fallthru
      _
    // Predicated region
    $region30: #{unet_up_conv2d_flat.1} parent=1 // pred_check
      _
    $region31: #{unet_up_conv2d_flat.1} parent=1 // pred_check_branch
      %94 = sbr.rel (0) target = $region33
    $region32: #{unet_up_conv2d_flat.1} parent=1 // pred_region
      _
    $region33: #{unet_up_conv2d_flat.1} parent=1 // pred_fallthru
      _
    // Predicated region
    $region34: #{unet_up_conv2d_flat.1} parent=1 // pred_check
      _
    $region35: #{unet_up_conv2d_flat.1} parent=1 // pred_check_branch
      %96 = sbr.rel (0) target = $region37
    $region36: #{unet_up_conv2d_flat.1} parent=1 // pred_region
      _
    $region37: #{unet_up_conv2d_flat.1} parent=1 // pred_fallthru
      _
    // Predicated region
    $region38: #{unet_up_conv2d_flat.1} parent=1 // pred_check
      _
    $region39: #{unet_up_conv2d_flat.1} parent=1 // pred_check_branch
      %98 = sbr.rel (0) target = $region41
    $region40: #{unet_up_conv2d_flat.1} parent=1 // pred_region
      %99 = dma.done [#allocation3], 256
    $region41: #{unet_up_conv2d_flat.1} parent=1 // pred_fallthru
      _
    // Predicated region
    $region42: #{unet_up_conv2d_flat.1} parent=1 // pred_check
      _
    $region43: #{unet_up_conv2d_flat.1} parent=1 // pred_check_branch
      %101 = sbr.rel (0) target = $region45
    $region44: #{unet_up_conv2d_flat.1} parent=1 // pred_region
      %102 = dma.done [#allocation6], 128
    $region45: #{unet_up_conv2d_flat.1} parent=1 // pred_fallthru
      _
    // Predicated region
    $region46: #{unet_up_conv2d_flat.1} parent=1 // pred_check
      _
    $region47: #{unet_up_conv2d_flat.1} parent=1 // pred_check_branch
      %104 = sbr.rel (0) target = $region49
    $region48: #{unet_up_conv2d_flat.1} parent=1 // pred_region
      %105 = dma.done [#allocation6], 2048
    $region49: #{unet_up_conv2d_flat.1} parent=1 // pred_fallthru
      _
    // Predicated region
    $region50: #{unet_up_conv2d_flat.1} parent=1 // pred_check
      _
    $region51: #{unet_up_conv2d_flat.1} parent=1 // pred_check_branch
      %107 = sbr.rel (0) target = $region53
    $region52: #{unet_up_conv2d_flat.1} parent=1 // pred_region
      %108 = dma.done [#allocation9], 2048
    $region53: #{unet_up_conv2d_flat.1} parent=1 // pred_fallthru
      _
    // Predicated region
    $region54: #{unet_up_conv2d_flat.1} parent=1 // pred_check
      _
    $region55: #{unet_up_conv2d_flat.1} parent=1 // pred_check_branch
      %110 = sbr.rel (0) target = $region57
    $region56: #{unet_up_conv2d_flat.1} parent=1 // pred_region
      %111 = dma.done [#allocation9], 6144
    $region57: #{unet_up_conv2d_flat.1} parent=1 // pred_fallthru
      _
    // Predicated region
    $region58: #{unet_up_conv2d_flat.1} parent=1 // pred_check
      _
    $region59: #{unet_up_conv2d_flat.1} parent=1 // pred_check_branch
      %113 = sbr.rel (0) target = $region61
    $region60: #{unet_up_conv2d_flat.1} parent=1 // pred_region
      %114 = dma.done [#allocation12], 3072
    $region61: #{unet_up_conv2d_flat.1} parent=1 // pred_fallthru
      _
    %v116 = vld [vmem:[#allocation2] sm:$0xff]
    %v117 = vld [vmem:[#allocation2 + $0x8] sm:$0xff]
    %v118 = vld [vmem:[#allocation5] sm:$0xf]
    %v119 = vld [vmem:[#allocation5 + $0x4] sm:$0xf]
    %v122 = vunpack.c.l.b16 %v118
    %v123 = vunpack.c.l.b16 %v119
    %v124 = vpack.c.b16 %v122, %v122
    %v125 = vpack.c.b16 %v123, %v123
    %v127 = vshrl.u32 %v124, 16
    %v129 = vrot.slane %v127, 7
    %v130 = vshll.u32 %v124, 16
    %v132 = vor.u32 %v129, %v130
    %v134 = vshrl.u32 %v125, 16
    %v136 = vrot.slane %v134, 7
    %v137 = vshll.u32 %v125, 16
    %v139 = vor.u32 %v136, %v137
    %vm142 = vcmask 1040384
    %vm143 = vsmask.f32 256
    %vm144 = vmand %vm142, %vm143
    %v145 = vsel %vm144, 0, %v132
    %v146 = vsel %vm144, 0, %v139
    %v149 = vunpack.c.l.b16 %v145
    %v150 = vunpack.c.l.b16 %v146
    %v151 = vld [vmem:[#allocation7] sm:$0xf]
    %v152 = vld [vmem:[#allocation7 + $0x4] sm:$0xf]
    %v153 = vld [vmem:[#allocation7 + $0x8] sm:$0xf]
    %v154 = vld [vmem:[#allocation7 + $0xc] sm:$0xf]
    %v155 = vld [vmem:[#allocation7 + $0x10] sm:$0xf]
    %v156 = vld [vmem:[#allocation7 + $0x14] sm:$0xf]
    %v157 = vld [vmem:[#allocation7 + $0x18] sm:$0xf]
    %v158 = vld [vmem:[#allocation7 + $0x1c] sm:$0xf]
    %v159 = vld [vmem:[#allocation7 + $0x20] sm:$0xf]
    %v160 = vld [vmem:[#allocation7 + $0x24] sm:$0xf]
    %v161 = vld [vmem:[#allocation7 + $0x28] sm:$0xf]
    %v162 = vld [vmem:[#allocation7 + $0x2c] sm:$0xf]
    %v163 = vld [vmem:[#allocation7 + $0x30] sm:$0xf]
    %v164 = vld [vmem:[#allocation7 + $0x34] sm:$0xf]
    %v165 = vld [vmem:[#allocation7 + $0x38] sm:$0xf]
    %v166 = vld [vmem:[#allocation7 + $0x3c] sm:$0xf]
    %v167 = vld [vmem:[#allocation7 + $0x40] sm:$0xf]
    %v168 = vld [vmem:[#allocation7 + $0x44] sm:$0xf]
    %v169 = vld [vmem:[#allocation7 + $0x48] sm:$0xf]
    %v170 = vld [vmem:[#allocation7 + $0x4c] sm:$0xf]
    %v171 = vld [vmem:[#allocation7 + $0x50] sm:$0xf]
    %v172 = vld [vmem:[#allocation7 + $0x54] sm:$0xf]
    %v173 = vld [vmem:[#allocation7 + $0x58] sm:$0xf]
    %v174 = vld [vmem:[#allocation7 + $0x5c] sm:$0xf]
    %v175 = vld [vmem:[#allocation7 + $0x60] sm:$0xf]
    %v176 = vld [vmem:[#allocation7 + $0x64] sm:$0xf]
    %v177 = vld [vmem:[#allocation7 + $0x68] sm:$0xf]
    %v178 = vld [vmem:[#allocation7 + $0x6c] sm:$0xf]
    %v179 = vld [vmem:[#allocation7 + $0x70] sm:$0xf]
    %v180 = vld [vmem:[#allocation7 + $0x74] sm:$0xf]
    %v181 = vld [vmem:[#allocation7 + $0x78] sm:$0xf]
    %v182 = vld [vmem:[#allocation7 + $0x7c] sm:$0xf]
    %v183 = vpack.c.b16 %v150, %v149
    %v184 = vpack.c.b16 %v123, %v122
    %v219 = vunpack.c.l.b16 %v151
    %v220 = vunpack.c.l.b16 %v152
    %v221 = vunpack.c.l.b16 %v153
    %v222 = vunpack.c.l.b16 %v154
    %v223 = vunpack.c.l.b16 %v155
    %v224 = vunpack.c.l.b16 %v156
    %v225 = vunpack.c.l.b16 %v157
    %v226 = vunpack.c.l.b16 %v158
    %v227 = vunpack.c.l.b16 %v159
    %v228 = vunpack.c.l.b16 %v160
    %v229 = vunpack.c.l.b16 %v161
    %v230 = vunpack.c.l.b16 %v162
    %v231 = vunpack.c.l.b16 %v163
    %v232 = vunpack.c.l.b16 %v164
    %v233 = vunpack.c.l.b16 %v165
    %v234 = vunpack.c.l.b16 %v166
    %v235 = vunpack.c.l.b16 %v167
    %v236 = vunpack.c.l.b16 %v168
    %v237 = vunpack.c.l.b16 %v169
    %v238 = vunpack.c.l.b16 %v170
    %v239 = vunpack.c.l.b16 %v171
    %v240 = vunpack.c.l.b16 %v172
    %v241 = vunpack.c.l.b16 %v173
    %v242 = vunpack.c.l.b16 %v174
    %v243 = vunpack.c.l.b16 %v175
    %v244 = vunpack.c.l.b16 %v176
    %v245 = vunpack.c.l.b16 %v177
    %v246 = vunpack.c.l.b16 %v178
    %v247 = vunpack.c.l.b16 %v179
    %v248 = vunpack.c.l.b16 %v180
    %v249 = vunpack.c.l.b16 %v181
    %v250 = vunpack.c.l.b16 %v182
    %v251 = vpack.c.b16 %v220, %v219
    %v252 = vpack.c.b16 %v222, %v221
    %v253 = vpack.c.b16 %v224, %v223
    %v254 = vpack.c.b16 %v226, %v225
    %v255 = vpack.c.b16 %v228, %v227
    %v256 = vpack.c.b16 %v230, %v229
    %v257 = vpack.c.b16 %v232, %v231
    %v258 = vpack.c.b16 %v234, %v233
    %v259 = vpack.c.b16 %v236, %v235
    %v260 = vpack.c.b16 %v238, %v237
    %v261 = vpack.c.b16 %v240, %v239
    %v262 = vpack.c.b16 %v242, %v241
    %v263 = vpack.c.b16 %v244, %v243
    %v264 = vpack.c.b16 %v246, %v245
    %v265 = vpack.c.b16 %v248, %v247
    %v266 = vpack.c.b16 %v250, %v249
    %283 = vmatprep.subr.bf16.mxu0 0
    %284 = vmatpush1.bf16.msra.mxu0 %v251
    %285 = vmatprep.subr.bf16.mxu0 0
    %286 = vmatpush1.bf16.msra.mxu0 %v252
    %287 = vmatprep.subr.bf16.mxu0 0
    %288 = vmatpush1.bf16.msra.mxu0 %v253
    %289 = vmatprep.subr.bf16.mxu0 0
    %290 = vmatpush1.bf16.msra.mxu0 %v254
    %291 = vmatprep.subr.bf16.mxu0 0
    %292 = vmatpush1.bf16.msra.mxu0 %v255
    %293 = vmatprep.subr.bf16.mxu0 0
    %294 = vmatpush1.bf16.msra.mxu0 %v256
    %295 = vmatprep.subr.bf16.mxu0 0
    %296 = vmatpush1.bf16.msra.mxu0 %v257
    %297 = vmatprep.subr.bf16.mxu0 0
    %298 = vmatpush1.bf16.msra.mxu0 %v258
    %299 = vmatprep.subr.bf16.mxu0 0
    %300 = vmatpush1.bf16.msra.mxu0 %v259
    %301 = vmatprep.subr.bf16.mxu0 0
    %302 = vmatpush1.bf16.msra.mxu0 %v260
    %303 = vmatprep.subr.bf16.mxu0 0
    %304 = vmatpush1.bf16.msra.mxu0 %v261
    %305 = vmatprep.subr.bf16.mxu0 0
    %306 = vmatpush1.bf16.msra.mxu0 %v262
    %307 = vmatprep.subr.bf16.mxu0 0
    %308 = vmatpush1.bf16.msra.mxu0 %v263
    %309 = vmatprep.subr.bf16.mxu0 0
    %310 = vmatpush1.bf16.msra.mxu0 %v264
    %311 = vmatprep.subr.bf16.mxu0 0
    %312 = vmatpush1.bf16.msra.mxu0 %v265
    %313 = vmatprep.subr.bf16.mxu0 0
    %314 = vmatpush1.bf16.msra.mxu0 %v266
    %315 = vmatprep.mubr.bf16.mxu0 %v184
    %316 = vmatmul.mubr.bf16.gmra.mrb[0].mxu0 %v183
    %v317 = vpop.f32.mrb[0].mxu0
    %v318 = vadd.f32 0.0, %v317
    %v319 = vpop.f32.mrb[0].mxu0
    %v320 = vpop.f32.mrb[0].mxu0
    %v321 = vadd.f32 0.0, %v320
    %v322 = vpop.f32.mrb[0].mxu0
    %323 = vdwg.mxu0
    %v324 = vld [vmem:[%s6] sm:$0x1]
    %v326 = vlaneseq
    %v327 = vshrl.u32 %v326, 7
    %v328 = vsub.s32 0, %v327
    %v329 = vrot.slane %v324, %v328
    %v331 = vadd.f32 %v318, %v329
    %v332 = vadd.f32 %v321, %v329
    %v333 = vrot.slane %v130, 1
    %v334 = vor.u32 %v127, %v333
    %v335 = vrot.slane %v137, 1
    %v336 = vor.u32 %v134, %v335
    %vm339 = vcmask 1043456
    %vm340 = vsmask.f32 3328
    %vm341 = vmand %vm339, %vm340
    %v342 = vsel %vm341, %v334, 0
    %v343 = vsel %vm341, %v336, 0
    %v346 = vunpack.c.l.b16 %v342
    %v347 = vunpack.c.l.b16 %v343
    %v348 = vld [vmem:[#allocation8] sm:$0xf]
    %v349 = vld [vmem:[#allocation8 + $0x4] sm:$0xf]
    %v350 = vld [vmem:[#allocation8 + $0x8] sm:$0xf]
    %v351 = vld [vmem:[#allocation8 + $0xc] sm:$0xf]
    %v352 = vld [vmem:[#allocation8 + $0x10] sm:$0xf]
    %v353 = vld [vmem:[#allocation8 + $0x14] sm:$0xf]
    %v354 = vld [vmem:[#allocation8 + $0x18] sm:$0xf]
    %v355 = vld [vmem:[#allocation8 + $0x1c] sm:$0xf]
    %v356 = vld [vmem:[#allocation8 + $0x20] sm:$0xf]
    %v357 = vld [vmem:[#allocation8 + $0x24] sm:$0xf]
    %v358 = vld [vmem:[#allocation8 + $0x28] sm:$0xf]
    %v359 = vld [vmem:[#allocation8 + $0x2c] sm:$0xf]
    %v360 = vld [vmem:[#allocation8 + $0x30] sm:$0xf]
    %v361 = vld [vmem:[#allocation8 + $0x34] sm:$0xf]
    %v362 = vld [vmem:[#allocation8 + $0x38] sm:$0xf]
    %v363 = vld [vmem:[#allocation8 + $0x3c] sm:$0xf]
    %v364 = vld [vmem:[#allocation8 + $0x40] sm:$0xf]
    %v365 = vld [vmem:[#allocation8 + $0x44] sm:$0xf]
    %v366 = vld [vmem:[#allocation8 + $0x48] sm:$0xf]
    %v367 = vld [vmem:[#allocation8 + $0x4c] sm:$0xf]
    %v368 = vld [vmem:[#allocation8 + $0x50] sm:$0xf]
    %v369 = vld [vmem:[#allocation8 + $0x54] sm:$0xf]
    %v370 = vld [vmem:[#allocation8 + $0x58] sm:$0xf]
    %v371 = vld [vmem:[#allocation8 + $0x5c] sm:$0xf]
    %v372 = vld [vmem:[#allocation8 + $0x60] sm:$0xf]
    %v373 = vld [vmem:[#allocation8 + $0x64] sm:$0xf]
    %v374 = vld [vmem:[#allocation8 + $0x68] sm:$0xf]
    %v375 = vld [vmem:[#allocation8 + $0x6c] sm:$0xf]
    %v376 = vld [vmem:[#allocation8 + $0x70] sm:$0xf]
    %v377 = vld [vmem:[#allocation8 + $0x74] sm:$0xf]
    %v378 = vld [vmem:[#allocation8 + $0x78] sm:$0xf]
    %v379 = vld [vmem:[#allocation8 + $0x7c] sm:$0xf]
    %v380 = vpack.c.b16 %v347, %v346
    %v414 = vunpack.c.l.b16 %v348
    %v415 = vunpack.c.l.b16 %v349
    %v416 = vunpack.c.l.b16 %v350
    %v417 = vunpack.c.l.b16 %v351
    %v418 = vunpack.c.l.b16 %v352
    %v419 = vunpack.c.l.b16 %v353
    %v420 = vunpack.c.l.b16 %v354
    %v421 = vunpack.c.l.b16 %v355
    %v422 = vunpack.c.l.b16 %v356
    %v423 = vunpack.c.l.b16 %v357
    %v424 = vunpack.c.l.b16 %v358
    %v425 = vunpack.c.l.b16 %v359
    %v426 = vunpack.c.l.b16 %v360
    %v427 = vunpack.c.l.b16 %v361
    %v428 = vunpack.c.l.b16 %v362
    %v429 = vunpack.c.l.b16 %v363
    %v430 = vunpack.c.l.b16 %v364
    %v431 = vunpack.c.l.b16 %v365
    %v432 = vunpack.c.l.b16 %v366
    %v433 = vunpack.c.l.b16 %v367
    %v434 = vunpack.c.l.b16 %v368
    %v435 = vunpack.c.l.b16 %v369
    %v436 = vunpack.c.l.b16 %v370
    %v437 = vunpack.c.l.b16 %v371
    %v438 = vunpack.c.l.b16 %v372
    %v439 = vunpack.c.l.b16 %v373
    %v440 = vunpack.c.l.b16 %v374
    %v441 = vunpack.c.l.b16 %v375
    %v442 = vunpack.c.l.b16 %v376
    %v443 = vunpack.c.l.b16 %v377
    %v444 = vunpack.c.l.b16 %v378
    %v445 = vunpack.c.l.b16 %v379
    %v446 = vpack.c.b16 %v415, %v414
    %v447 = vpack.c.b16 %v417, %v416
    %v448 = vpack.c.b16 %v419, %v418
    %v449 = vpack.c.b16 %v421, %v420
    %v450 = vpack.c.b16 %v423, %v422
    %v451 = vpack.c.b16 %v425, %v424
    %v452 = vpack.c.b16 %v427, %v426
    %v453 = vpack.c.b16 %v429, %v428
    %v454 = vpack.c.b16 %v431, %v430
    %v455 = vpack.c.b16 %v433, %v432
    %v456 = vpack.c.b16 %v435, %v434
    %v457 = vpack.c.b16 %v437, %v436
    %v458 = vpack.c.b16 %v439, %v438
    %v459 = vpack.c.b16 %v441, %v440
    %v460 = vpack.c.b16 %v443, %v442
    %v461 = vpack.c.b16 %v445, %v444
    %478 = vmatprep.subr.bf16.mxu0 0
    %479 = vmatpush1.bf16.msra.mxu0 %v446
    %480 = vmatprep.subr.bf16.mxu0 0
    %481 = vmatpush1.bf16.msra.mxu0 %v447
    %482 = vmatprep.subr.bf16.mxu0 0
    %483 = vmatpush1.bf16.msra.mxu0 %v448
    %484 = vmatprep.subr.bf16.mxu0 0
    %485 = vmatpush1.bf16.msra.mxu0 %v449
    %486 = vmatprep.subr.bf16.mxu0 0
    %487 = vmatpush1.bf16.msra.mxu0 %v450
    %488 = vmatprep.subr.bf16.mxu0 0
    %489 = vmatpush1.bf16.msra.mxu0 %v451
    %490 = vmatprep.subr.bf16.mxu0 0
    %491 = vmatpush1.bf16.msra.mxu0 %v452
    %492 = vmatprep.subr.bf16.mxu0 0
    %493 = vmatpush1.bf16.msra.mxu0 %v453
    %494 = vmatprep.subr.bf16.mxu0 0
    %495 = vmatpush1.bf16.msra.mxu0 %v454
    %496 = vmatprep.subr.bf16.mxu0 0
    %497 = vmatpush1.bf16.msra.mxu0 %v455
    %498 = vmatprep.subr.bf16.mxu0 0
    %499 = vmatpush1.bf16.msra.mxu0 %v456
    %500 = vmatprep.subr.bf16.mxu0 0
    %501 = vmatpush1.bf16.msra.mxu0 %v457
    %502 = vmatprep.subr.bf16.mxu0 0
    %503 = vmatpush1.bf16.msra.mxu0 %v458
    %504 = vmatprep.subr.bf16.mxu0 0
    %505 = vmatpush1.bf16.msra.mxu0 %v459
    %506 = vmatprep.subr.bf16.mxu0 0
    %507 = vmatpush1.bf16.msra.mxu0 %v460
    %508 = vmatprep.subr.bf16.mxu0 0
    %509 = vmatpush1.bf16.msra.mxu0 %v461
    %510 = vmatprep.mubr.bf16.mxu0 %v380
    %511 = vmatmul.mubr.bf16.gmra.mrb[0].mxu0 %v184
    %v512 = vpop.f32.mrb[0].mxu0
    %v513 = vadd.f32 0.0, %v512
    %v514 = vpop.f32.mrb[0].mxu0
    %v515 = vpop.f32.mrb[0].mxu0
    %v516 = vadd.f32 0.0, %v515
    %v517 = vpop.f32.mrb[0].mxu0
    %518 = vdwg.mxu0
    %v519 = vadd.f32 %v513, %v329
    %v520 = vadd.f32 %v516, %v329
    %v521 = vpack.c.bf16 %v331, %v331
    %v522 = vpack.c.bf16 %v332, %v332
    %v523 = vpack.c.bf16 %v519, %v519
    %v524 = vpack.c.bf16 %v520, %v520
    %v527 = vunpack.c.h.b16 %v116
    %v528 = vunpack.c.h.b16 %v117
    %v529 = vpack.c.b16 %v527, %v527
    %v530 = vpack.c.b16 %v528, %v528
    %v532 = vshrl.u32 %v529, 16
    %v534 = vrot.slane %v532, 7
    %v535 = vshll.u32 %v529, 16
    %v537 = vor.u32 %v534, %v535
    %v539 = vshrl.u32 %v530, 16
    %v541 = vrot.slane %v539, 7
    %v542 = vshll.u32 %v530, 16
    %v544 = vor.u32 %v541, %v542
    %v547 = vsel %vm144, 0, %v537
    %v548 = vsel %vm144, 0, %v544
    %v550 = vshrl.u32 %v523, 16
    %v552 = vrot.slane %v550, 7
    %v553 = vshll.u32 %v523, 16
    %v555 = vor.u32 %v552, %v553
    %v557 = vshrl.u32 %v524, 16
    %v559 = vrot.slane %v557, 7
    %v560 = vshll.u32 %v524, 16
    %v562 = vor.u32 %v559, %v560
    %v565 = vsel %vm144, 0, %v555
    %v566 = vsel %vm144, 0, %v562
    %v575 = vunpack.c.l.b16 %v547
    %v576 = vunpack.c.l.b16 %v116
    %v577 = vunpack.c.l.b16 %v565
    %v578 = vunpack.c.l.b16 %v521
    %v579 = vunpack.c.l.b16 %v523
    %v580 = vunpack.c.l.b16 %v548
    %v581 = vunpack.c.l.b16 %v117
    %v582 = vunpack.c.l.b16 %v566
    %v583 = vunpack.c.l.b16 %v522
    %v584 = vunpack.c.l.b16 %v524
    %v585 = vld [vmem:[#allocation10] sm:$0xf]
    %v586 = vld [vmem:[#allocation10 + $0x4] sm:$0xf]
    %v587 = vld [vmem:[#allocation10 + $0x8] sm:$0xf]
    %v588 = vld [vmem:[#allocation10 + $0xc] sm:$0xf]
    %v589 = vld [vmem:[#allocation10 + $0x10] sm:$0xf]
    %v590 = vld [vmem:[#allocation10 + $0x14] sm:$0xf]
    %v591 = vld [vmem:[#allocation10 + $0x18] sm:$0xf]
    %v592 = vld [vmem:[#allocation10 + $0x1c] sm:$0xf]
    %v593 = vld [vmem:[#allocation10 + $0x20] sm:$0xf]
    %v594 = vld [vmem:[#allocation10 + $0x24] sm:$0xf]
    %v595 = vld [vmem:[#allocation10 + $0x28] sm:$0xf]
    %v596 = vld [vmem:[#allocation10 + $0x2c] sm:$0xf]
    %v597 = vld [vmem:[#allocation10 + $0x30] sm:$0xf]
    %v598 = vld [vmem:[#allocation10 + $0x34] sm:$0xf]
    %v599 = vld [vmem:[#allocation10 + $0x38] sm:$0xf]
    %v600 = vld [vmem:[#allocation10 + $0x3c] sm:$0xf]
    %v601 = vld [vmem:[#allocation10 + $0x40] sm:$0xf]
    %v602 = vld [vmem:[#allocation10 + $0x44] sm:$0xf]
    %v603 = vld [vmem:[#allocation10 + $0x48] sm:$0xf]
    %v604 = vld [vmem:[#allocation10 + $0x4c] sm:$0xf]
    %v605 = vld [vmem:[#allocation10 + $0x50] sm:$0xf]
    %v606 = vld [vmem:[#allocation10 + $0x54] sm:$0xf]
    %v607 = vld [vmem:[#allocation10 + $0x58] sm:$0xf]
    %v608 = vld [vmem:[#allocation10 + $0x5c] sm:$0xf]
    %v609 = vld [vmem:[#allocation10 + $0x60] sm:$0xf]
    %v610 = vld [vmem:[#allocation10 + $0x64] sm:$0xf]
    %v611 = vld [vmem:[#allocation10 + $0x68] sm:$0xf]
    %v612 = vld [vmem:[#allocation10 + $0x6c] sm:$0xf]
    %v613 = vld [vmem:[#allocation10 + $0x70] sm:$0xf]
    %v614 = vld [vmem:[#allocation10 + $0x74] sm:$0xf]
    %v615 = vld [vmem:[#allocation10 + $0x78] sm:$0xf]
    %v616 = vld [vmem:[#allocation10 + $0x7c] sm:$0xf]
    %v617 = vld [vmem:[#allocation10 + $0x80] sm:$0xf]
    %v618 = vld [vmem:[#allocation10 + $0x84] sm:$0xf]
    %v619 = vld [vmem:[#allocation10 + $0x88] sm:$0xf]
    %v620 = vld [vmem:[#allocation10 + $0x8c] sm:$0xf]
    %v621 = vld [vmem:[#allocation10 + $0x90] sm:$0xf]
    %v622 = vld [vmem:[#allocation10 + $0x94] sm:$0xf]
    %v623 = vld [vmem:[#allocation10 + $0x98] sm:$0xf]
    %v624 = vld [vmem:[#allocation10 + $0x9c] sm:$0xf]
    %v625 = vld [vmem:[#allocation10 + $0xa0] sm:$0xf]
    %v626 = vld [vmem:[#allocation10 + $0xa4] sm:$0xf]
    %v627 = vld [vmem:[#allocation10 + $0xa8] sm:$0xf]
    %v628 = vld [vmem:[#allocation10 + $0xac] sm:$0xf]
    %v629 = vld [vmem:[#allocation10 + $0xb0] sm:$0xf]
    %v630 = vld [vmem:[#allocation10 + $0xb4] sm:$0xf]
    %v631 = vld [vmem:[#allocation10 + $0xb8] sm:$0xf]
    %v632 = vld [vmem:[#allocation10 + $0xbc] sm:$0xf]
    %v633 = vld [vmem:[#allocation10 + $0xc0] sm:$0xf]
    %v634 = vld [vmem:[#allocation10 + $0xc4] sm:$0xf]
    %v635 = vld [vmem:[#allocation10 + $0xc8] sm:$0xf]
    %v636 = vld [vmem:[#allocation10 + $0xcc] sm:$0xf]
    %v637 = vld [vmem:[#allocation10 + $0xd0] sm:$0xf]
    %v638 = vld [vmem:[#allocation10 + $0xd4] sm:$0xf]
    %v639 = vld [vmem:[#allocation10 + $0xd8] sm:$0xf]
    %v640 = vld [vmem:[#allocation10 + $0xdc] sm:$0xf]
    %v641 = vld [vmem:[#allocation10 + $0xe0] sm:$0xf]
    %v642 = vld [vmem:[#allocation10 + $0xe4] sm:$0xf]
    %v643 = vld [vmem:[#allocation10 + $0xe8] sm:$0xf]
    %v644 = vld [vmem:[#allocation10 + $0xec] sm:$0xf]
    %v645 = vld [vmem:[#allocation10 + $0xf0] sm:$0xf]
    %v646 = vld [vmem:[#allocation10 + $0xf4] sm:$0xf]
    %v647 = vld [vmem:[#allocation10 + $0xf8] sm:$0xf]
    %v648 = vld [vmem:[#allocation10 + $0xfc] sm:$0xf]
    %v649 = vld [vmem:[#allocation10 + $0x100] sm:$0xf]
    %v650 = vld [vmem:[#allocation10 + $0x104] sm:$0xf]
    %v651 = vld [vmem:[#allocation10 + $0x108] sm:$0xf]
    %v652 = vld [vmem:[#allocation10 + $0x10c] sm:$0xf]
    %v653 = vld [vmem:[#allocation10 + $0x110] sm:$0xf]
    %v654 = vld [vmem:[#allocation10 + $0x114] sm:$0xf]
    %v655 = vld [vmem:[#allocation10 + $0x118] sm:$0xf]
    %v656 = vld [vmem:[#allocation10 + $0x11c] sm:$0xf]
    %v657 = vld [vmem:[#allocation10 + $0x120] sm:$0xf]
    %v658 = vld [vmem:[#allocation10 + $0x124] sm:$0xf]
    %v659 = vld [vmem:[#allocation10 + $0x128] sm:$0xf]
    %v660 = vld [vmem:[#allocation10 + $0x12c] sm:$0xf]
    %v661 = vld [vmem:[#allocation10 + $0x130] sm:$0xf]
    %v662 = vld [vmem:[#allocation10 + $0x134] sm:$0xf]
    %v663 = vld [vmem:[#allocation10 + $0x138] sm:$0xf]
    %v664 = vld [vmem:[#allocation10 + $0x13c] sm:$0xf]
    %v665 = vld [vmem:[#allocation10 + $0x140] sm:$0xf]
    %v666 = vld [vmem:[#allocation10 + $0x144] sm:$0xf]
    %v667 = vld [vmem:[#allocation10 + $0x148] sm:$0xf]
    %v668 = vld [vmem:[#allocation10 + $0x14c] sm:$0xf]
    %v669 = vld [vmem:[#allocation10 + $0x150] sm:$0xf]
    %v670 = vld [vmem:[#allocation10 + $0x154] sm:$0xf]
    %v671 = vld [vmem:[#allocation10 + $0x158] sm:$0xf]
    %v672 = vld [vmem:[#allocation10 + $0x15c] sm:$0xf]
    %v673 = vld [vmem:[#allocation10 + $0x160] sm:$0xf]
    %v674 = vld [vmem:[#allocation10 + $0x164] sm:$0xf]
    %v675 = vld [vmem:[#allocation10 + $0x168] sm:$0xf]
    %v676 = vld [vmem:[#allocation10 + $0x16c] sm:$0xf]
    %v677 = vld [vmem:[#allocation10 + $0x170] sm:$0xf]
    %v678 = vld [vmem:[#allocation10 + $0x174] sm:$0xf]
    %v679 = vld [vmem:[#allocation10 + $0x178] sm:$0xf]
    %v680 = vld [vmem:[#allocation10 + $0x17c] sm:$0xf]
    %v681 = vpack.c.b16 %v580, %v575
    %v682 = vpack.c.b16 %v581, %v576
    %v683 = vpack.c.b16 %v528, %v527
    %v684 = vpack.c.b16 %v582, %v577
    %v685 = vpack.c.b16 %v583, %v578
    %v686 = vpack.c.b16 %v584, %v579
    %v789 = vunpack.c.l.b16 %v585
    %v790 = vunpack.c.l.b16 %v586
    %v791 = vunpack.c.l.b16 %v587
    %v792 = vunpack.c.l.b16 %v588
    %v793 = vunpack.c.l.b16 %v589
    %v794 = vunpack.c.l.b16 %v590
    %v795 = vunpack.c.l.b16 %v591
    %v796 = vunpack.c.l.b16 %v592
    %v797 = vunpack.c.l.b16 %v593
    %v798 = vunpack.c.l.b16 %v594
    %v799 = vunpack.c.l.b16 %v595
    %v800 = vunpack.c.l.b16 %v596
    %v801 = vunpack.c.l.b16 %v597
    %v802 = vunpack.c.l.b16 %v598
    %v803 = vunpack.c.l.b16 %v599
    %v804 = vunpack.c.l.b16 %v600
    %v805 = vunpack.c.l.b16 %v601
    %v806 = vunpack.c.l.b16 %v602
    %v807 = vunpack.c.l.b16 %v603
    %v808 = vunpack.c.l.b16 %v604
    %v809 = vunpack.c.l.b16 %v605
    %v810 = vunpack.c.l.b16 %v606
    %v811 = vunpack.c.l.b16 %v607
    %v812 = vunpack.c.l.b16 %v608
    %v813 = vunpack.c.l.b16 %v609
    %v814 = vunpack.c.l.b16 %v610
    %v815 = vunpack.c.l.b16 %v611
    %v816 = vunpack.c.l.b16 %v612
    %v817 = vunpack.c.l.b16 %v613
    %v818 = vunpack.c.l.b16 %v614
    %v819 = vunpack.c.l.b16 %v615
    %v820 = vunpack.c.l.b16 %v616
    %v821 = vunpack.c.l.b16 %v617
    %v822 = vunpack.c.l.b16 %v618
    %v823 = vunpack.c.l.b16 %v619
    %v824 = vunpack.c.l.b16 %v620
    %v825 = vunpack.c.l.b16 %v621
    %v826 = vunpack.c.l.b16 %v622
    %v827 = vunpack.c.l.b16 %v623
    %v828 = vunpack.c.l.b16 %v624
    %v829 = vunpack.c.l.b16 %v625
    %v830 = vunpack.c.l.b16 %v626
    %v831 = vunpack.c.l.b16 %v627
    %v832 = vunpack.c.l.b16 %v628
    %v833 = vunpack.c.l.b16 %v629
    %v834 = vunpack.c.l.b16 %v630
    %v835 = vunpack.c.l.b16 %v631
    %v836 = vunpack.c.l.b16 %v632
    %v837 = vunpack.c.l.b16 %v633
    %v838 = vunpack.c.l.b16 %v634
    %v839 = vunpack.c.l.b16 %v635
    %v840 = vunpack.c.l.b16 %v636
    %v841 = vunpack.c.l.b16 %v637
    %v842 = vunpack.c.l.b16 %v638
    %v843 = vunpack.c.l.b16 %v639
    %v844 = vunpack.c.l.b16 %v640
    %v845 = vunpack.c.l.b16 %v641
    %v846 = vunpack.c.l.b16 %v642
    %v847 = vunpack.c.l.b16 %v643
    %v848 = vunpack.c.l.b16 %v644
    %v849 = vunpack.c.l.b16 %v645
    %v850 = vunpack.c.l.b16 %v646
    %v851 = vunpack.c.l.b16 %v647
    %v852 = vunpack.c.l.b16 %v648
    %v853 = vunpack.c.l.b16 %v649
    %v854 = vunpack.c.l.b16 %v650
    %v855 = vunpack.c.l.b16 %v651
    %v856 = vunpack.c.l.b16 %v652
    %v857 = vunpack.c.l.b16 %v653
    %v858 = vunpack.c.l.b16 %v654
    %v859 = vunpack.c.l.b16 %v655
    %v860 = vunpack.c.l.b16 %v656
    %v861 = vunpack.c.l.b16 %v657
    %v862 = vunpack.c.l.b16 %v658
    %v863 = vunpack.c.l.b16 %v659
    %v864 = vunpack.c.l.b16 %v660
    %v865 = vunpack.c.l.b16 %v661
    %v866 = vunpack.c.l.b16 %v662
    %v867 = vunpack.c.l.b16 %v663
    %v868 = vunpack.c.l.b16 %v664
    %v869 = vunpack.c.l.b16 %v665
    %v870 = vunpack.c.l.b16 %v666
    %v871 = vunpack.c.l.b16 %v667
    %v872 = vunpack.c.l.b16 %v668
    %v873 = vunpack.c.l.b16 %v669
    %v874 = vunpack.c.l.b16 %v670
    %v875 = vunpack.c.l.b16 %v671
    %v876 = vunpack.c.l.b16 %v672
    %v877 = vunpack.c.l.b16 %v673
    %v878 = vunpack.c.l.b16 %v674
    %v879 = vunpack.c.l.b16 %v675
    %v880 = vunpack.c.l.b16 %v676
    %v881 = vunpack.c.l.b16 %v677
    %v882 = vunpack.c.l.b16 %v678
    %v883 = vunpack.c.l.b16 %v679
    %v884 = vunpack.c.l.b16 %v680
    %v885 = vpack.c.b16 %v790, %v789
    %v886 = vpack.c.b16 %v792, %v791
    %v887 = vpack.c.b16 %v794, %v793
    %v888 = vpack.c.b16 %v796, %v795
    %v889 = vpack.c.b16 %v798, %v797
    %v890 = vpack.c.b16 %v800, %v799
    %v891 = vpack.c.b16 %v802, %v801
    %v892 = vpack.c.b16 %v804, %v803
    %v893 = vpack.c.b16 %v806, %v805
    %v894 = vpack.c.b16 %v808, %v807
    %v895 = vpack.c.b16 %v810, %v809
    %v896 = vpack.c.b16 %v812, %v811
    %v897 = vpack.c.b16 %v814, %v813
    %v898 = vpack.c.b16 %v816, %v815
    %v899 = vpack.c.b16 %v818, %v817
    %v900 = vpack.c.b16 %v820, %v819
    %v901 = vpack.c.b16 %v822, %v821
    %v902 = vpack.c.b16 %v824, %v823
    %v903 = vpack.c.b16 %v826, %v825
    %v904 = vpack.c.b16 %v828, %v827
    %v905 = vpack.c.b16 %v830, %v829
    %v906 = vpack.c.b16 %v832, %v831
    %v907 = vpack.c.b16 %v834, %v833
    %v908 = vpack.c.b16 %v836, %v835
    %v909 = vpack.c.b16 %v838, %v837
    %v910 = vpack.c.b16 %v840, %v839
    %v911 = vpack.c.b16 %v842, %v841
    %v912 = vpack.c.b16 %v844, %v843
    %v913 = vpack.c.b16 %v846, %v845
    %v914 = vpack.c.b16 %v848, %v847
    %v915 = vpack.c.b16 %v850, %v849
    %v916 = vpack.c.b16 %v852, %v851
    %v917 = vpack.c.b16 %v854, %v853
    %v918 = vpack.c.b16 %v856, %v855
    %v919 = vpack.c.b16 %v858, %v857
    %v920 = vpack.c.b16 %v860, %v859
    %v921 = vpack.c.b16 %v862, %v861
    %v922 = vpack.c.b16 %v864, %v863
    %v923 = vpack.c.b16 %v866, %v865
    %v924 = vpack.c.b16 %v868, %v867
    %v925 = vpack.c.b16 %v870, %v869
    %v926 = vpack.c.b16 %v872, %v871
    %v927 = vpack.c.b16 %v874, %v873
    %v928 = vpack.c.b16 %v876, %v875
    %v929 = vpack.c.b16 %v878, %v877
    %v930 = vpack.c.b16 %v880, %v879
    %v931 = vpack.c.b16 %v882, %v881
    %v932 = vpack.c.b16 %v884, %v883
    %981 = vmatprep.subr.bf16.mxu0 0
    %982 = vmatpush1.bf16.msra.mxu0 %v885
    %983 = vmatprep.subr.bf16.mxu0 0
    %984 = vmatpush1.bf16.msra.mxu0 %v886
    %985 = vmatprep.subr.bf16.mxu0 0
    %986 = vmatpush1.bf16.msra.mxu0 %v887
    %987 = vmatprep.subr.bf16.mxu0 0
    %988 = vmatpush1.bf16.msra.mxu0 %v888
    %989 = vmatprep.subr.bf16.mxu0 0
    %990 = vmatpush1.bf16.msra.mxu0 %v889
    %991 = vmatprep.subr.bf16.mxu0 0
    %992 = vmatpush1.bf16.msra.mxu0 %v890
    %993 = vmatprep.subr.bf16.mxu0 0
    %994 = vmatpush1.bf16.msra.mxu0 %v891
    %995 = vmatprep.subr.bf16.mxu0 0
    %996 = vmatpush1.bf16.msra.mxu0 %v892
    %997 = vmatprep.subr.bf16.mxu0 0
    %998 = vmatpush1.bf16.msra.mxu0 %v893
    %999 = vmatprep.subr.bf16.mxu0 0
    %1000 = vmatpush1.bf16.msra.mxu0 %v894
    %1001 = vmatprep.subr.bf16.mxu0 0
    %1002 = vmatpush1.bf16.msra.mxu0 %v895
    %1003 = vmatprep.subr.bf16.mxu0 0
    %1004 = vmatpush1.bf16.msra.mxu0 %v896
    %1005 = vmatprep.subr.bf16.mxu0 0
    %1006 = vmatpush1.bf16.msra.mxu0 %v897
    %1007 = vmatprep.subr.bf16.mxu0 0
    %1008 = vmatpush1.bf16.msra.mxu0 %v898
    %1009 = vmatprep.subr.bf16.mxu0 0
    %1010 = vmatpush1.bf16.msra.mxu0 %v899
    %1011 = vmatprep.subr.bf16.mxu0 0
    %1012 = vmatpush1.bf16.msra.mxu0 %v900
    %1013 = vmatprep.mubr.bf16.mxu0 %v682
    %1014 = vmatmul.mubr.bf16.gmra.mrb[0].mxu0 %v681
    %v1015 = vpop.f32.mrb[0].mxu0
    %v1016 = vadd.f32 0.0, %v1015
    %v1017 = vpop.f32.mrb[0].mxu0
    %v1018 = vpop.f32.mrb[0].mxu0
    %v1019 = vadd.f32 0.0, %v1018
    %v1020 = vpop.f32.mrb[0].mxu0
    %1021 = vdwg.mxu0
    %1022 = vmatprep.subr.bf16.mxu0 0
    %1023 = vmatpush1.bf16.msra.mxu0 %v901
    %1024 = vmatprep.subr.bf16.mxu0 0
    %1025 = vmatpush1.bf16.msra.mxu0 %v902
    %1026 = vmatprep.subr.bf16.mxu0 0
    %1027 = vmatpush1.bf16.msra.mxu0 %v903
    %1028 = vmatprep.subr.bf16.mxu0 0
    %1029 = vmatpush1.bf16.msra.mxu0 %v904
    %1030 = vmatprep.subr.bf16.mxu0 0
    %1031 = vmatpush1.bf16.msra.mxu0 %v905
    %1032 = vmatprep.subr.bf16.mxu0 0
    %1033 = vmatpush1.bf16.msra.mxu0 %v906
    %1034 = vmatprep.subr.bf16.mxu0 0
    %1035 = vmatpush1.bf16.msra.mxu0 %v907
    %1036 = vmatprep.subr.bf16.mxu0 0
    %1037 = vmatpush1.bf16.msra.mxu0 %v908
    %1038 = vmatprep.subr.bf16.mxu0 0
    %1039 = vmatpush1.bf16.msra.mxu0 %v909
    %1040 = vmatprep.subr.bf16.mxu0 0
    %1041 = vmatpush1.bf16.msra.mxu0 %v910
    %1042 = vmatprep.subr.bf16.mxu0 0
    %1043 = vmatpush1.bf16.msra.mxu0 %v911
    %1044 = vmatprep.subr.bf16.mxu0 0
    %1045 = vmatpush1.bf16.msra.mxu0 %v912
    %1046 = vmatprep.subr.bf16.mxu0 0
    %1047 = vmatpush1.bf16.msra.mxu0 %v913
    %1048 = vmatprep.subr.bf16.mxu0 0
    %1049 = vmatpush1.bf16.msra.mxu0 %v914
    %1050 = vmatprep.subr.bf16.mxu0 0
    %1051 = vmatpush1.bf16.msra.mxu0 %v915
    %1052 = vmatprep.subr.bf16.mxu0 0
    %1053 = vmatpush1.bf16.msra.mxu0 %v916
    %1054 = vmatprep.mubr.bf16.mxu0 %v684
    %1055 = vmatmul.mubr.bf16.gmra.mrb[0].mxu0 %v683
    %v1056 = vpop.f32.mrb[0].mxu0
    %v1057 = vadd.f32 %v1016, %v1056
    %v1058 = vpop.f32.mrb[0].mxu0
    %v1059 = vpop.f32.mrb[0].mxu0
    %v1060 = vadd.f32 %v1019, %v1059
    %v1061 = vpop.f32.mrb[0].mxu0
    %1062 = vdwg.mxu0
    %1063 = vmatprep.subr.bf16.mxu0 0
    %1064 = vmatpush1.bf16.msra.mxu0 %v917
    %1065 = vmatprep.subr.bf16.mxu0 0
    %1066 = vmatpush1.bf16.msra.mxu0 %v918
    %1067 = vmatprep.subr.bf16.mxu0 0
    %1068 = vmatpush1.bf16.msra.mxu0 %v919
    %1069 = vmatprep.subr.bf16.mxu0 0
    %1070 = vmatpush1.bf16.msra.mxu0 %v920
    %1071 = vmatprep.subr.bf16.mxu0 0
    %1072 = vmatpush1.bf16.msra.mxu0 %v921
    %1073 = vmatprep.subr.bf16.mxu0 0
    %1074 = vmatpush1.bf16.msra.mxu0 %v922
    %1075 = vmatprep.subr.bf16.mxu0 0
    %1076 = vmatpush1.bf16.msra.mxu0 %v923
    %1077 = vmatprep.subr.bf16.mxu0 0
    %1078 = vmatpush1.bf16.msra.mxu0 %v924
    %1079 = vmatprep.subr.bf16.mxu0 0
    %1080 = vmatpush1.bf16.msra.mxu0 %v925
    %1081 = vmatprep.subr.bf16.mxu0 0
    %1082 = vmatpush1.bf16.msra.mxu0 %v926
    %1083 = vmatprep.subr.bf16.mxu0 0
    %1084 = vmatpush1.bf16.msra.mxu0 %v927
    %1085 = vmatprep.subr.bf16.mxu0 0
    %1086 = vmatpush1.bf16.msra.mxu0 %v928
    %1087 = vmatprep.subr.bf16.mxu0 0
    %1088 = vmatpush1.bf16.msra.mxu0 %v929
    %1089 = vmatprep.subr.bf16.mxu0 0
    %1090 = vmatpush1.bf16.msra.mxu0 %v930
    %1091 = vmatprep.subr.bf16.mxu0 0
    %1092 = vmatpush1.bf16.msra.mxu0 %v931
    %1093 = vmatprep.subr.bf16.mxu0 0
    %1094 = vmatpush1.bf16.msra.mxu0 %v932
    %1095 = vmatprep.mubr.bf16.mxu0 %v686
    %1096 = vmatmul.mubr.bf16.gmra.mrb[0].mxu0 %v685
    %v1097 = vpop.f32.mrb[0].mxu0
    %v1098 = vadd.f32 %v1057, %v1097
    %v1099 = vpop.f32.mrb[0].mxu0
    %v1100 = vpop.f32.mrb[0].mxu0
    %v1101 = vadd.f32 %v1060, %v1100
    %v1102 = vpop.f32.mrb[0].mxu0
    %1103 = vdwg.mxu0
    %v1104 = vld [vmem:[%s7] sm:$0x1]
    %v1106 = vlaneseq
    %v1107 = vshrl.u32 %v1106, 7
    %v1108 = vsub.s32 0, %v1107
    %v1109 = vrot.slane %v1104, %v1108
    %v1111 = vadd.f32 %v1098, %v1109
    %v1112 = vadd.f32 %v1101, %v1109
    %v1113 = vmax.f32 %v1111, 0.0
    %v1114 = vmax.f32 %v1112, 0.0
    %v1115 = vpack.c.b16 %v576, %v576
    %v1116 = vpack.c.b16 %v581, %v581
    %v1118 = vshrl.u32 %v1115, 16
    %v1120 = vshll.u32 %v1115, 16
    %v1122 = vrot.slane %v1120, 1
    %v1123 = vor.u32 %v1118, %v1122
    %v1125 = vshrl.u32 %v1116, 16
    %v1127 = vshll.u32 %v1116, 16
    %v1129 = vrot.slane %v1127, 1
    %v1130 = vor.u32 %v1125, %v1129
    %v1133 = vsel %vm341, %v1123, 0
    %v1134 = vsel %vm341, %v1130, 0
    %v1136 = vshrl.u32 %v521, 16
    %v1138 = vshll.u32 %v521, 16
    %v1140 = vrot.slane %v1138, 1
    %v1141 = vor.u32 %v1136, %v1140
    %v1143 = vshrl.u32 %v522, 16
    %v1145 = vshll.u32 %v522, 16
    %v1147 = vrot.slane %v1145, 1
    %v1148 = vor.u32 %v1143, %v1147
    %v1151 = vsel %vm341, %v1141, 0
    %v1152 = vsel %vm341, %v1148, 0
    %v1157 = vunpack.c.l.b16 %v1133
    %v1158 = vunpack.c.l.b16 %v1151
    %v1159 = vunpack.c.l.b16 %v1134
    %v1160 = vunpack.c.l.b16 %v1152
    %v1161 = vpack.c.b16 %v1159, %v1157
    %v1162 = vpack.c.b16 %v1160, %v1158
    %1165 = vmatprep.subr.bf16.mxu0 0
    %1166 = vmatpush1.bf16.msra.mxu0 %v885
    %1167 = vmatprep.subr.bf16.mxu0 0
    %1168 = vmatpush1.bf16.msra.mxu0 %v886
    %1169 = vmatprep.subr.bf16.mxu0 0
    %1170 = vmatpush1.bf16.msra.mxu0 %v887
    %1171 = vmatprep.subr.bf16.mxu0 0
    %1172 = vmatpush1.bf16.msra.mxu0 %v888
    %1173 = vmatprep.subr.bf16.mxu0 0
    %1174 = vmatpush1.bf16.msra.mxu0 %v889
    %1175 = vmatprep.subr.bf16.mxu0 0
    %1176 = vmatpush1.bf16.msra.mxu0 %v890
    %1177 = vmatprep.subr.bf16.mxu0 0
    %1178 = vmatpush1.bf16.msra.mxu0 %v891
    %1179 = vmatprep.subr.bf16.mxu0 0
    %1180 = vmatpush1.bf16.msra.mxu0 %v892
    %1181 = vmatprep.subr.bf16.mxu0 0
    %1182 = vmatpush1.bf16.msra.mxu0 %v893
    %1183 = vmatprep.subr.bf16.mxu0 0
    %1184 = vmatpush1.bf16.msra.mxu0 %v894
    %1185 = vmatprep.subr.bf16.mxu0 0
    %1186 = vmatpush1.bf16.msra.mxu0 %v895
    %1187 = vmatprep.subr.bf16.mxu0 0
    %1188 = vmatpush1.bf16.msra.mxu0 %v896
    %1189 = vmatprep.subr.bf16.mxu0 0
    %1190 = vmatpush1.bf16.msra.mxu0 %v897
    %1191 = vmatprep.subr.bf16.mxu0 0
    %1192 = vmatpush1.bf16.msra.mxu0 %v898
    %1193 = vmatprep.subr.bf16.mxu0 0
    %1194 = vmatpush1.bf16.msra.mxu0 %v899
    %1195 = vmatprep.subr.bf16.mxu0 0
    %1196 = vmatpush1.bf16.msra.mxu0 %v900
    %1197 = vmatprep.mubr.bf16.mxu0 %v683
    %1198 = vmatmul.mubr.bf16.gmra.mrb[0].mxu0 %v682
    %v1199 = vpop.f32.mrb[0].mxu0
    %v1200 = vadd.f32 0.0, %v1199
    %v1201 = vpop.f32.mrb[0].mxu0
    %v1202 = vpop.f32.mrb[0].mxu0
    %v1203 = vadd.f32 0.0, %v1202
    %v1204 = vpop.f32.mrb[0].mxu0
    %1205 = vdwg.mxu0
    %1206 = vmatprep.subr.bf16.mxu0 0
    %1207 = vmatpush1.bf16.msra.mxu0 %v901
    %1208 = vmatprep.subr.bf16.mxu0 0
    %1209 = vmatpush1.bf16.msra.mxu0 %v902
    %1210 = vmatprep.subr.bf16.mxu0 0
    %1211 = vmatpush1.bf16.msra.mxu0 %v903
    %1212 = vmatprep.subr.bf16.mxu0 0
    %1213 = vmatpush1.bf16.msra.mxu0 %v904
    %1214 = vmatprep.subr.bf16.mxu0 0
    %1215 = vmatpush1.bf16.msra.mxu0 %v905
    %1216 = vmatprep.subr.bf16.mxu0 0
    %1217 = vmatpush1.bf16.msra.mxu0 %v906
    %1218 = vmatprep.subr.bf16.mxu0 0
    %1219 = vmatpush1.bf16.msra.mxu0 %v907
    %1220 = vmatprep.subr.bf16.mxu0 0
    %1221 = vmatpush1.bf16.msra.mxu0 %v908
    %1222 = vmatprep.subr.bf16.mxu0 0
    %1223 = vmatpush1.bf16.msra.mxu0 %v909
    %1224 = vmatprep.subr.bf16.mxu0 0
    %1225 = vmatpush1.bf16.msra.mxu0 %v910
    %1226 = vmatprep.subr.bf16.mxu0 0
    %1227 = vmatpush1.bf16.msra.mxu0 %v911
    %1228 = vmatprep.subr.bf16.mxu0 0
    %1229 = vmatpush1.bf16.msra.mxu0 %v912
    %1230 = vmatprep.subr.bf16.mxu0 0
    %1231 = vmatpush1.bf16.msra.mxu0 %v913
    %1232 = vmatprep.subr.bf16.mxu0 0
    %1233 = vmatpush1.bf16.msra.mxu0 %v914
    %1234 = vmatprep.subr.bf16.mxu0 0
    %1235 = vmatpush1.bf16.msra.mxu0 %v915
    %1236 = vmatprep.subr.bf16.mxu0 0
    %1237 = vmatpush1.bf16.msra.mxu0 %v916
    %1238 = vmatprep.mubr.bf16.mxu0 %v685
    %1239 = vmatmul.mubr.bf16.gmra.mrb[0].mxu0 %v1161
    %v1240 = vpop.f32.mrb[0].mxu0
    %v1241 = vadd.f32 %v1200, %v1240
    %v1242 = vpop.f32.mrb[0].mxu0
    %v1243 = vpop.f32.mrb[0].mxu0
    %v1244 = vadd.f32 %v1203, %v1243
    %v1245 = vpop.f32.mrb[0].mxu0
    %1246 = vdwg.mxu0
    %1247 = vmatprep.subr.bf16.mxu0 0
    %1248 = vmatpush1.bf16.msra.mxu0 %v917
    %1249 = vmatprep.subr.bf16.mxu0 0
    %1250 = vmatpush1.bf16.msra.mxu0 %v918
    %1251 = vmatprep.subr.bf16.mxu0 0
    %1252 = vmatpush1.bf16.msra.mxu0 %v919
    %1253 = vmatprep.subr.bf16.mxu0 0
    %1254 = vmatpush1.bf16.msra.mxu0 %v920
    %1255 = vmatprep.subr.bf16.mxu0 0
    %1256 = vmatpush1.bf16.msra.mxu0 %v921
    %1257 = vmatprep.subr.bf16.mxu0 0
    %1258 = vmatpush1.bf16.msra.mxu0 %v922
    %1259 = vmatprep.subr.bf16.mxu0 0
    %1260 = vmatpush1.bf16.msra.mxu0 %v923
    %1261 = vmatprep.subr.bf16.mxu0 0
    %1262 = vmatpush1.bf16.msra.mxu0 %v924
    %1263 = vmatprep.subr.bf16.mxu0 0
    %1264 = vmatpush1.bf16.msra.mxu0 %v925
    %1265 = vmatprep.subr.bf16.mxu0 0
    %1266 = vmatpush1.bf16.msra.mxu0 %v926
    %1267 = vmatprep.subr.bf16.mxu0 0
    %1268 = vmatpush1.bf16.msra.mxu0 %v927
    %1269 = vmatprep.subr.bf16.mxu0 0
    %1270 = vmatpush1.bf16.msra.mxu0 %v928
    %1271 = vmatprep.subr.bf16.mxu0 0
    %1272 = vmatpush1.bf16.msra.mxu0 %v929
    %1273 = vmatprep.subr.bf16.mxu0 0
    %1274 = vmatpush1.bf16.msra.mxu0 %v930
    %1275 = vmatprep.subr.bf16.mxu0 0
    %1276 = vmatpush1.bf16.msra.mxu0 %v931
    %1277 = vmatprep.subr.bf16.mxu0 0
    %1278 = vmatpush1.bf16.msra.mxu0 %v932
    %1279 = vmatprep.mubr.bf16.mxu0 %v1162
    %1280 = vmatmul.mubr.bf16.gmra.mrb[0].mxu0 %v686
    %v1281 = vpop.f32.mrb[0].mxu0
    %v1282 = vadd.f32 %v1241, %v1281
    %v1283 = vpop.f32.mrb[0].mxu0
    %v1284 = vpop.f32.mrb[0].mxu0
    %v1285 = vadd.f32 %v1244, %v1284
    %v1286 = vpop.f32.mrb[0].mxu0
    %1287 = vdwg.mxu0
    %v1288 = vadd.f32 %v1282, %v1109
    %v1289 = vadd.f32 %v1285, %v1109
    %v1290 = vmax.f32 %v1288, 0.0
    %v1291 = vmax.f32 %v1289, 0.0
    %v1292 = vpack.c.bf16 %v1113, %v1113
    %v1293 = vpack.c.bf16 %v1114, %v1114
    %v1294 = vpack.c.bf16 %v1290, %v1290
    %v1295 = vpack.c.bf16 %v1291, %v1291
    %v1297 = vshrl.u32 %v1294, 16
    %v1299 = vrot.slane %v1297, 7
    %v1300 = vshll.u32 %v1294, 16
    %v1302 = vor.u32 %v1299, %v1300
    %v1304 = vshrl.u32 %v1295, 16
    %v1306 = vrot.slane %v1304, 7
    %v1307 = vshll.u32 %v1295, 16
    %v1309 = vor.u32 %v1306, %v1307
    %v1312 = vsel %vm144, 0, %v1302
    %v1313 = vsel %vm144, 0, %v1309
    %v1320 = vunpack.c.l.b16 %v1312
    %v1321 = vunpack.c.l.b16 %v1292
    %v1322 = vunpack.c.l.b16 %v1294
    %v1323 = vunpack.c.l.b16 %v1313
    %v1324 = vunpack.c.l.b16 %v1293
    %v1325 = vunpack.c.l.b16 %v1295
    %v1326 = vld [vmem:[#allocation11] sm:$0xf]
    %v1327 = vld [vmem:[#allocation11 + $0x4] sm:$0xf]
    %v1328 = vld [vmem:[#allocation11 + $0x8] sm:$0xf]
    %v1329 = vld [vmem:[#allocation11 + $0xc] sm:$0xf]
    %v1330 = vld [vmem:[#allocation11 + $0x10] sm:$0xf]
    %v1331 = vld [vmem:[#allocation11 + $0x14] sm:$0xf]
    %v1332 = vld [vmem:[#allocation11 + $0x18] sm:$0xf]
    %v1333 = vld [vmem:[#allocation11 + $0x1c] sm:$0xf]
    %v1334 = vld [vmem:[#allocation11 + $0x20] sm:$0xf]
    %v1335 = vld [vmem:[#allocation11 + $0x24] sm:$0xf]
    %v1336 = vld [vmem:[#allocation11 + $0x28] sm:$0xf]
    %v1337 = vld [vmem:[#allocation11 + $0x2c] sm:$0xf]
    %v1338 = vld [vmem:[#allocation11 + $0x30] sm:$0xf]
    %v1339 = vld [vmem:[#allocation11 + $0x34] sm:$0xf]
    %v1340 = vld [vmem:[#allocation11 + $0x38] sm:$0xf]
    %v1341 = vld [vmem:[#allocation11 + $0x3c] sm:$0xf]
    %v1342 = vld [vmem:[#allocation11 + $0x40] sm:$0xf]
    %v1343 = vld [vmem:[#allocation11 + $0x44] sm:$0xf]
    %v1344 = vld [vmem:[#allocation11 + $0x48] sm:$0xf]
    %v1345 = vld [vmem:[#allocation11 + $0x4c] sm:$0xf]
    %v1346 = vld [vmem:[#allocation11 + $0x50] sm:$0xf]
    %v1347 = vld [vmem:[#allocation11 + $0x54] sm:$0xf]
    %v1348 = vld [vmem:[#allocation11 + $0x58] sm:$0xf]
    %v1349 = vld [vmem:[#allocation11 + $0x5c] sm:$0xf]
    %v1350 = vld [vmem:[#allocation11 + $0x60] sm:$0xf]
    %v1351 = vld [vmem:[#allocation11 + $0x64] sm:$0xf]
    %v1352 = vld [vmem:[#allocation11 + $0x68] sm:$0xf]
    %v1353 = vld [vmem:[#allocation11 + $0x6c] sm:$0xf]
    %v1354 = vld [vmem:[#allocation11 + $0x70] sm:$0xf]
    %v1355 = vld [vmem:[#allocation11 + $0x74] sm:$0xf]
    %v1356 = vld [vmem:[#allocation11 + $0x78] sm:$0xf]
    %v1357 = vld [vmem:[#allocation11 + $0x7c] sm:$0xf]
    %v1358 = vld [vmem:[#allocation11 + $0x80] sm:$0xf]
    %v1359 = vld [vmem:[#allocation11 + $0x84] sm:$0xf]
    %v1360 = vld [vmem:[#allocation11 + $0x88] sm:$0xf]
    %v1361 = vld [vmem:[#allocation11 + $0x8c] sm:$0xf]
    %v1362 = vld [vmem:[#allocation11 + $0x90] sm:$0xf]
    %v1363 = vld [vmem:[#allocation11 + $0x94] sm:$0xf]
    %v1364 = vld [vmem:[#allocation11 + $0x98] sm:$0xf]
    %v1365 = vld [vmem:[#allocation11 + $0x9c] sm:$0xf]
    %v1366 = vld [vmem:[#allocation11 + $0xa0] sm:$0xf]
    %v1367 = vld [vmem:[#allocation11 + $0xa4] sm:$0xf]
    %v1368 = vld [vmem:[#allocation11 + $0xa8] sm:$0xf]
    %v1369 = vld [vmem:[#allocation11 + $0xac] sm:$0xf]
    %v1370 = vld [vmem:[#allocation11 + $0xb0] sm:$0xf]
    %v1371 = vld [vmem:[#allocation11 + $0xb4] sm:$0xf]
    %v1372 = vld [vmem:[#allocation11 + $0xb8] sm:$0xf]
    %v1373 = vld [vmem:[#allocation11 + $0xbc] sm:$0xf]
    %v1374 = vpack.c.b16 %v1323, %v1320
    %v1375 = vpack.c.b16 %v1324, %v1321
    %v1376 = vpack.c.b16 %v1325, %v1322
    %v1428 = vunpack.c.l.b16 %v1326
    %v1429 = vunpack.c.l.b16 %v1327
    %v1430 = vunpack.c.l.b16 %v1328
    %v1431 = vunpack.c.l.b16 %v1329
    %v1432 = vunpack.c.l.b16 %v1330
    %v1433 = vunpack.c.l.b16 %v1331
    %v1434 = vunpack.c.l.b16 %v1332
    %v1435 = vunpack.c.l.b16 %v1333
    %v1436 = vunpack.c.l.b16 %v1334
    %v1437 = vunpack.c.l.b16 %v1335
    %v1438 = vunpack.c.l.b16 %v1336
    %v1439 = vunpack.c.l.b16 %v1337
    %v1440 = vunpack.c.l.b16 %v1338
    %v1441 = vunpack.c.l.b16 %v1339
    %v1442 = vunpack.c.l.b16 %v1340
    %v1443 = vunpack.c.l.b16 %v1341
    %v1444 = vunpack.c.l.b16 %v1342
    %v1445 = vunpack.c.l.b16 %v1343
    %v1446 = vunpack.c.l.b16 %v1344
    %v1447 = vunpack.c.l.b16 %v1345
    %v1448 = vunpack.c.l.b16 %v1346
    %v1449 = vunpack.c.l.b16 %v1347
    %v1450 = vunpack.c.l.b16 %v1348
    %v1451 = vunpack.c.l.b16 %v1349
    %v1452 = vunpack.c.l.b16 %v1350
    %v1453 = vunpack.c.l.b16 %v1351
    %v1454 = vunpack.c.l.b16 %v1352
    %v1455 = vunpack.c.l.b16 %v1353
    %v1456 = vunpack.c.l.b16 %v1354
    %v1457 = vunpack.c.l.b16 %v1355
    %v1458 = vunpack.c.l.b16 %v1356
    %v1459 = vunpack.c.l.b16 %v1357
    %v1460 = vunpack.c.l.b16 %v1358
    %v1461 = vunpack.c.l.b16 %v1359
    %v1462 = vunpack.c.l.b16 %v1360
    %v1463 = vunpack.c.l.b16 %v1361
    %v1464 = vunpack.c.l.b16 %v1362
    %v1465 = vunpack.c.l.b16 %v1363
    %v1466 = vunpack.c.l.b16 %v1364
    %v1467 = vunpack.c.l.b16 %v1365
    %v1468 = vunpack.c.l.b16 %v1366
    %v1469 = vunpack.c.l.b16 %v1367
    %v1470 = vunpack.c.l.b16 %v1368
    %v1471 = vunpack.c.l.b16 %v1369
    %v1472 = vunpack.c.l.b16 %v1370
    %v1473 = vunpack.c.l.b16 %v1371
    %v1474 = vunpack.c.l.b16 %v1372
    %v1475 = vunpack.c.l.b16 %v1373
    %v1476 = vpack.c.b16 %v1429, %v1428
    %v1477 = vpack.c.b16 %v1431, %v1430
    %v1478 = vpack.c.b16 %v1433, %v1432
    %v1479 = vpack.c.b16 %v1435, %v1434
    %v1480 = vpack.c.b16 %v1437, %v1436
    %v1481 = vpack.c.b16 %v1439, %v1438
    %v1482 = vpack.c.b16 %v1441, %v1440
    %v1483 = vpack.c.b16 %v1443, %v1442
    %v1484 = vpack.c.b16 %v1445, %v1444
    %v1485 = vpack.c.b16 %v1447, %v1446
    %v1486 = vpack.c.b16 %v1449, %v1448
    %v1487 = vpack.c.b16 %v1451, %v1450
    %v1488 = vpack.c.b16 %v1453, %v1452
    %v1489 = vpack.c.b16 %v1455, %v1454
    %v1490 = vpack.c.b16 %v1457, %v1456
    %v1491 = vpack.c.b16 %v1459, %v1458
    %v1492 = vpack.c.b16 %v1461, %v1460
    %v1493 = vpack.c.b16 %v1463, %v1462
    %v1494 = vpack.c.b16 %v1465, %v1464
    %v1495 = vpack.c.b16 %v1467, %v1466
    %v1496 = vpack.c.b16 %v1469, %v1468
    %v1497 = vpack.c.b16 %v1471, %v1470
    %v1498 = vpack.c.b16 %v1473, %v1472
    %v1499 = vpack.c.b16 %v1475, %v1474
    %1524 = vmatprep.subr.bf16.mxu0 0
    %1525 = vmatpush1.bf16.msra.mxu0 %v1476
    %1526 = vmatprep.subr.bf16.mxu0 0
    %1527 = vmatpush1.bf16.msra.mxu0 %v1477
    %1528 = vmatprep.subr.bf16.mxu0 0
    %1529 = vmatpush1.bf16.msra.mxu0 %v1478
    %1530 = vmatprep.subr.bf16.mxu0 0
    %1531 = vmatpush1.bf16.msra.mxu0 %v1479
    %1532 = vmatprep.subr.bf16.mxu0 0
    %1533 = vmatpush1.bf16.msra.mxu0 %v1480
    %1534 = vmatprep.subr.bf16.mxu0 0
    %1535 = vmatpush1.bf16.msra.mxu0 %v1481
    %1536 = vmatprep.subr.bf16.mxu0 0
    %1537 = vmatpush1.bf16.msra.mxu0 %v1482
    %1538 = vmatprep.subr.bf16.mxu0 0
    %1539 = vmatpush1.bf16.msra.mxu0 %v1483
    %1540 = vmatprep.subr.bf16.mxu0 0
    %1541 = vmatpush1.bf16.msra.mxu0 %v1484
    %1542 = vmatprep.subr.bf16.mxu0 0
    %1543 = vmatpush1.bf16.msra.mxu0 %v1485
    %1544 = vmatprep.subr.bf16.mxu0 0
    %1545 = vmatpush1.bf16.msra.mxu0 %v1486
    %1546 = vmatprep.subr.bf16.mxu0 0
    %1547 = vmatpush1.bf16.msra.mxu0 %v1487
    %1548 = vmatprep.subr.bf16.mxu0 0
    %1549 = vmatpush1.bf16.msra.mxu0 %v1488
    %1550 = vmatprep.subr.bf16.mxu0 0
    %1551 = vmatpush1.bf16.msra.mxu0 %v1489
    %1552 = vmatprep.subr.bf16.mxu0 0
    %1553 = vmatpush1.bf16.msra.mxu0 %v1490
    %1554 = vmatprep.subr.bf16.mxu0 0
    %1555 = vmatpush1.bf16.msra.mxu0 %v1491
    %1556 = vmatprep.mubr.bf16.mxu0 %v1375
    %1557 = vmatmul.mubr.bf16.gmra.mrb[0].mxu0 %v1374
    %v1558 = vpop.f32.mrb[0].mxu0
    %v1559 = vadd.f32 0.0, %v1558
    %v1560 = vpop.f32.mrb[0].mxu0
    %v1561 = vpop.f32.mrb[0].mxu0
    %v1562 = vadd.f32 0.0, %v1561
    %v1563 = vpop.f32.mrb[0].mxu0
    %1564 = vdwg.mxu0
    %1565 = vmatprep.subr.bf16.mxu0 0
    %1566 = vmatpush1.bf16.msra.mxu0 %v1492
    %1567 = vmatprep.subr.bf16.mxu0 0
    %1568 = vmatpush1.bf16.msra.mxu0 %v1493
    %1569 = vmatprep.subr.bf16.mxu0 0
    %1570 = vmatpush1.bf16.msra.mxu0 %v1494
    %1571 = vmatprep.subr.bf16.mxu0 0
    %1572 = vmatpush1.bf16.msra.mxu0 %v1495
    %1573 = vmatprep.subr.bf16.mxu0 0
    %1574 = vmatpush1.bf16.msra.mxu0 %v1496
    %1575 = vmatprep.subr.bf16.mxu0 0
    %1576 = vmatpush1.bf16.msra.mxu0 %v1497
    %1577 = vmatprep.subr.bf16.mxu0 0
    %1578 = vmatpush1.bf16.msra.mxu0 %v1498
    %1579 = vmatprep.subr.bf16.mxu0 0
    %1580 = vmatpush1.bf16.msra.mxu0 %v1499
    %1581 = vmatprep.subr.bf16.mxu0 0
    %1582 = vmatpush1.bf16.msra.mxu0 0
    %1583 = vmatprep.subr.bf16.mxu0 0
    %1584 = vmatpush1.bf16.msra.mxu0 0
    %1585 = vmatprep.subr.bf16.mxu0 0
    %1586 = vmatpush1.bf16.msra.mxu0 0
    %1587 = vmatprep.subr.bf16.mxu0 0
    %1588 = vmatpush1.bf16.msra.mxu0 0
    %1589 = vmatprep.subr.bf16.mxu0 0
    %1590 = vmatpush1.bf16.msra.mxu0 0
    %1591 = vmatprep.subr.bf16.mxu0 0
    %1592 = vmatpush1.bf16.msra.mxu0 0
    %1593 = vmatprep.subr.bf16.mxu0 0
    %1594 = vmatpush1.bf16.msra.mxu0 0
    %1595 = vmatprep.subr.bf16.mxu0 0
    %1596 = vmatpush1.bf16.msra.mxu0 0
    %1597 = vmatprep.mubr.bf16.mxu0 0
    %1598 = vmatmul.mubr.bf16.gmra.mrb[0].mxu0 %v1376
    %v1599 = vpop.f32.mrb[0].mxu0
    %v1600 = vadd.f32 %v1559, %v1599
    %v1601 = vpop.f32.mrb[0].mxu0
    %v1602 = vpop.f32.mrb[0].mxu0
    %v1603 = vadd.f32 %v1562, %v1602
    %v1604 = vpop.f32.mrb[0].mxu0
    %1605 = vdwg.mxu0
    %v1606 = vld [vmem:[%s8] sm:$0x1]
    %v1608 = vlaneseq
    %v1609 = vshrl.u32 %v1608, 7
    %v1610 = vsub.s32 0, %v1609
    %v1611 = vrot.slane %v1606, %v1610
    %v1613 = vadd.f32 %v1600, %v1611
    %v1614 = vadd.f32 %v1603, %v1611
    %v1615 = vmax.f32 %v1613, 0.0
    %v1616 = vmax.f32 %v1614, 0.0
    %v1618 = vshrl.u32 %v1292, 16
    %v1620 = vshll.u32 %v1292, 16
    %v1622 = vrot.slane %v1620, 1
    %v1623 = vor.u32 %v1618, %v1622
    %v1625 = vshrl.u32 %v1293, 16
    %v1627 = vshll.u32 %v1293, 16
    %v1629 = vrot.slane %v1627, 1
    %v1630 = vor.u32 %v1625, %v1629
    %v1633 = vsel %vm341, %v1623, 0
    %v1634 = vsel %vm341, %v1630, 0
    %v1637 = vunpack.c.l.b16 %v1633
    %v1638 = vunpack.c.l.b16 %v1634
    %v1639 = vpack.c.b16 %v1638, %v1637
    %1641 = vmatprep.subr.bf16.mxu0 0
    %1642 = vmatpush1.bf16.msra.mxu0 %v1476
    %1643 = vmatprep.subr.bf16.mxu0 0
    %1644 = vmatpush1.bf16.msra.mxu0 %v1477
    %1645 = vmatprep.subr.bf16.mxu0 0
    %1646 = vmatpush1.bf16.msra.mxu0 %v1478
    %1647 = vmatprep.subr.bf16.mxu0 0
    %1648 = vmatpush1.bf16.msra.mxu0 %v1479
    %1649 = vmatprep.subr.bf16.mxu0 0
    %1650 = vmatpush1.bf16.msra.mxu0 %v1480
    %1651 = vmatprep.subr.bf16.mxu0 0
    %1652 = vmatpush1.bf16.msra.mxu0 %v1481
    %1653 = vmatprep.subr.bf16.mxu0 0
    %1654 = vmatpush1.bf16.msra.mxu0 %v1482
    %1655 = vmatprep.subr.bf16.mxu0 0
    %1656 = vmatpush1.bf16.msra.mxu0 %v1483
    %1657 = vmatprep.subr.bf16.mxu0 0
    %1658 = vmatpush1.bf16.msra.mxu0 %v1484
    %1659 = vmatprep.subr.bf16.mxu0 0
    %1660 = vmatpush1.bf16.msra.mxu0 %v1485
    %1661 = vmatprep.subr.bf16.mxu0 0
    %1662 = vmatpush1.bf16.msra.mxu0 %v1486
    %1663 = vmatprep.subr.bf16.mxu0 0
    %1664 = vmatpush1.bf16.msra.mxu0 %v1487
    %1665 = vmatprep.subr.bf16.mxu0 0
    %1666 = vmatpush1.bf16.msra.mxu0 %v1488
    %1667 = vmatprep.subr.bf16.mxu0 0
    %1668 = vmatpush1.bf16.msra.mxu0 %v1489
    %1669 = vmatprep.subr.bf16.mxu0 0
    %1670 = vmatpush1.bf16.msra.mxu0 %v1490
    %1671 = vmatprep.subr.bf16.mxu0 0
    %1672 = vmatpush1.bf16.msra.mxu0 %v1491
    %1673 = vmatprep.mubr.bf16.mxu0 %v1376
    %1674 = vmatmul.mubr.bf16.gmra.mrb[0].mxu0 %v1375
    %v1675 = vpop.f32.mrb[0].mxu0
    %v1676 = vadd.f32 0.0, %v1675
    %v1677 = vpop.f32.mrb[0].mxu0
    %v1678 = vpop.f32.mrb[0].mxu0
    %v1679 = vadd.f32 0.0, %v1678
    %v1680 = vpop.f32.mrb[0].mxu0
    %1681 = vdwg.mxu0
    %1682 = vmatprep.subr.bf16.mxu0 0
    %1683 = vmatpush1.bf16.msra.mxu0 %v1492
    %1684 = vmatprep.subr.bf16.mxu0 0
    %1685 = vmatpush1.bf16.msra.mxu0 %v1493
    %1686 = vmatprep.subr.bf16.mxu0 0
    %1687 = vmatpush1.bf16.msra.mxu0 %v1494
    %1688 = vmatprep.subr.bf16.mxu0 0
    %1689 = vmatpush1.bf16.msra.mxu0 %v1495
    %1690 = vmatprep.subr.bf16.mxu0 0
    %1691 = vmatpush1.bf16.msra.mxu0 %v1496
    %1692 = vmatprep.subr.bf16.mxu0 0
    %1693 = vmatpush1.bf16.msra.mxu0 %v1497
    %1694 = vmatprep.subr.bf16.mxu0 0
    %1695 = vmatpush1.bf16.msra.mxu0 %v1498
    %1696 = vmatprep.subr.bf16.mxu0 0
    %1697 = vmatpush1.bf16.msra.mxu0 %v1499
    %1698 = vmatprep.subr.bf16.mxu0 0
    %1699 = vmatpush1.bf16.msra.mxu0 0
    %1700 = vmatprep.subr.bf16.mxu0 0
    %1701 = vmatpush1.bf16.msra.mxu0 0
    %1702 = vmatprep.subr.bf16.mxu0 0
    %1703 = vmatpush1.bf16.msra.mxu0 0
    %1704 = vmatprep.subr.bf16.mxu0 0
    %1705 = vmatpush1.bf16.msra.mxu0 0
    %1706 = vmatprep.subr.bf16.mxu0 0
    %1707 = vmatpush1.bf16.msra.mxu0 0
    %1708 = vmatprep.subr.bf16.mxu0 0
    %1709 = vmatpush1.bf16.msra.mxu0 0
    %1710 = vmatprep.subr.bf16.mxu0 0
    %1711 = vmatpush1.bf16.msra.mxu0 0
    %1712 = vmatprep.subr.bf16.mxu0 0
    %1713 = vmatpush1.bf16.msra.mxu0 0
    %1714 = vmatprep.mubr.bf16.mxu0 0
    %1715 = vmatmul.mubr.bf16.gmra.mrb[0].mxu0 %v1639
    %v1716 = vpop.f32.mrb[0].mxu0
    %v1717 = vadd.f32 %v1676, %v1716
    %v1718 = vpop.f32.mrb[0].mxu0
    %v1719 = vpop.f32.mrb[0].mxu0
    %v1720 = vadd.f32 %v1679, %v1719
    %v1721 = vpop.f32.mrb[0].mxu0
    %1722 = vdwg.mxu0
    %v1723 = vadd.f32 %v1717, %v1611
    %v1724 = vadd.f32 %v1720, %v1611
    %v1725 = vmax.f32 %v1723, 0.0
    %v1726 = vmax.f32 %v1724, 0.0
    %1727 = vst [vmem:[#allocation13] sm:$0xff] %v1615
    %1728 = vst [vmem:[#allocation13 + $0x8] sm:$0xff] %v1725
    %1729 = vst [vmem:[#allocation13 + $0x10] sm:$0xff] %v1616
    %1730 = vst [vmem:[#allocation13 + $0x18] sm:$0xff] %v1726
    // Predicated region
    $region62: #{unet_up_conv2d_flat.1} parent=1 // pred_check
      _
    $region63: #{unet_up_conv2d_flat.1} parent=1 // pred_check_branch
      %1732 = sbr.rel (0) target = $region65
    $region64: #{unet_up_conv2d_flat.1} parent=1 // pred_region
      %s1734 = ssub.s32 512, 512
      %1735 = vsyncadd [#allocation4], %s1734
      %s1736 = sshll.u32 [#allocation13], 4
      %s1737 = int_to_ptr.vmem [resolvable:$true] %s1736
      %1742 = dma.vmem_to_hbm [thread:$0]  %s1737, 512, %s9, [#allocation4], 256, 256, 16
    $region65: #{unet_up_conv2d_flat.1} parent=1 // pred_fallthru
      _
    // Predicated region
    $region66: #{unet_up_conv2d_flat.1} parent=1 // pred_check
      _
    $region67: #{unet_up_conv2d_flat.1} parent=1 // pred_check_branch
      %1744 = sbr.rel (0) target = $region69
    $region68: #{unet_up_conv2d_flat.1} parent=1 // pred_region
      %1745 = dma.done [#allocation4], 512
    $region69: #{unet_up_conv2d_flat.1} parent=1 // pred_fallthru
      _
    %1746 = vsyncpa [#allocation3], 1
    %1747 = vsyncpa [#allocation6], 1
    %1748 = vsyncpa [#allocation9], 1
    %1749 = vsyncpa [#allocation12], 1
    %1750 = vsyncpa [#allocation4], 1

</llo_original>
